<compile_context>
chip_gen: v6e
topology: v6e:2x2x1
jax: 0.10.0
libtpu: 0.0.40
codegen_flags: <defaults>
</compile_context>

<pallas_src>
from functools import partial

import numpy as np
import jax
import jax.numpy as jnp
from jax.experimental import pallas as pl
from jax.experimental.pallas import tpu as pltpu  # noqa: F401  (kept for parity)


# ----------------------------------------------------------------------------
# Fused kernel: 3x3 conv (tap FMAs) + BN + ReLU + x2 upsample + fusion + GC
# ----------------------------------------------------------------------------
def _egc_kernel(low_ref, xp_ref, u_ref, cpack_ref, w2_ref, lpack_ref, o_ref,
                *, B, Cin, C, P, Wh):
    L = u_ref.shape[0]                 # (Hh-1)*(Wh+2) + Wh : valid padded span
    HW = u_ref.shape[1]
    Wp = Wh + 2                        # padded row stride

    cpack = cpack_ref[...]                              # (C, 9*Cin + 2 + 2P)
    wmat = cpack[:, :9 * Cin]                           # BN-scaled conv weights
    bn_b = cpack[:, 9 * Cin:9 * Cin + 1]                # (C, 1) folded BN bias
    wmask = cpack[:, 9 * Cin + 1:9 * Cin + 2]           # (C, 1) conv_mask weight
    w1t = cpack[:, 9 * Cin + 2:9 * Cin + 2 + 2 * P]     # (C, 2P) stage-1 W^T

    # ---- 3x3 conv: 9 lane-shifted taps accumulated on the VPU --------------
    xp = xp_ref[...]                                    # (B, Cin, (Hh+2)*Wp)
    acc = jnp.zeros((B, C, L), jnp.float32)
    for ky in range(3):
        for kx in range(3):
            s = ky * Wp + kx
            win = xp[:, :, s:s + L]                     # (B, Cin, L) lane shift
            for cin in range(Cin):
                j = (ky * 3 + kx) * Cin + cin
                wcol = wmat[:, j:j + 1]                 # (C, 1)
                acc = acc + wcol[None, :, :] * win[:, cin:cin + 1, :]

    # ---- nearest x2 upsample + valid-window extraction: one 0/1 matmul -----
    up = jnp.dot(acc.reshape(B * C, L), u_ref[...],
                 preferred_element_type=jnp.float32).reshape(B, C, HW)
    high = jnp.maximum(up + bn_b[None, :, :], 0.0)      # folded BN bias + ReLU
    fus = low_ref[...] * high                           # (B, C, HW) lane-dense

    # ---- GC attention pooling (batched; conv_mask bias cancels in softmax) -
    logits = jnp.sum(fus * wmask[None, :, :], axis=1, keepdims=True)   # (B,1,HW)
    e = jnp.exp(logits - jnp.max(logits, axis=2, keepdims=True))
    inv_den = 1.0 / jnp.sum(e, axis=2, keepdims=True)                  # (B,1,1)
    ctx = jnp.sum(fus * e, axis=2, keepdims=True) * inv_den            # (B,C,1)

    # ---- channel_add / channel_mul MLPs on the VPU (batched over B) --------
    lpack = lpack_ref[...]                              # (3, 2P)
    b1, ln_g, ln_b = lpack[0:1, :], lpack[1:2, :], lpack[2:3, :]

    # stage 1: t[b,p] = sum_c w1t[c,p] * ctx[b,c]   (sublane reduce, no MXU)
    t = jnp.sum(w1t[None, :, :] * ctx, axis=1, keepdims=True) \
        + b1[None, :, :]                                # (B, 1, 2P)

    def _ln(v):                                         # LayerNorm([P,1,1]) core
        mu = jnp.mean(v, axis=2, keepdims=True)
        var = jnp.mean((v - mu) ** 2, axis=2, keepdims=True)
        return (v - mu) * jax.lax.rsqrt(var + 1e-5)

    tn = jnp.concatenate([_ln(t[:, :, :P]), _ln(t[:, :, P:])], axis=2)
    tcat = jnp.maximum(tn * ln_g[None, :, :] + ln_b[None, :, :], 0.0)  # (B,1,2P)

    # stage 2: block-diag W2 with bias folded as last column (lane reduce)
    w2aug = w2_ref[...]                                 # (2C, 2P + 1)
    out2 = (jnp.sum(w2aug[:, :2 * P][None, :, :] * tcat, axis=2, keepdims=True)
            + w2aug[:, 2 * P:][None, :, :])             # (B, 2C, 1)
    add_t = out2[:, :C, :]                              # (B, C, 1)
    mul_t = jax.nn.sigmoid(out2[:, C:, :])              # (B, C, 1)

    o_ref[...] = fus * mul_t + add_t                    # lane-dense (B,C,HW) store


# ----------------------------------------------------------------------------
# Wrapper (NCHW in / NCHW out; only free reshapes on the big tensors)
# ----------------------------------------------------------------------------
@jax.jit
def egc_forward(low_nchw, high_nchw, kp):
    B, C, H, W = low_nchw.shape
    _, Cin, Hh, Wh = high_nchw.shape
    HW = H * W
    P = kp['lpack'].shape[1] // 2
    Wp = Wh + 2
    L = (Hh - 1) * Wp + Wh             # last valid padded-flat index + 1

    low_flat = low_nchw.reshape(B, C, HW).astype(jnp.float32)  # free reshape
    # channel-major, zero-padded, flattened padded spatial (tiny tensor)
    xp = jnp.pad(high_nchw.astype(jnp.float32),
                 ((0, 0), (0, 0), (1, 1), (1, 1))).reshape(B, Cin, (Hh + 2) * Wp)

    # constant 0/1 matrix fusing valid-window extraction (padded-flat -> HhWh)
    # with the nearest x2 upsample, producing (B*C, HW) directly.
    dy = np.arange(H)[:, None] // 2
    dx = np.arange(W)[None, :] // 2
    src = (dy * Wp + dx).reshape(-1)                    # (HW,) source flat idx
    u = np.zeros((L, HW), np.float32)
    u[src, np.arange(HW)] = 1.0
    u = jnp.asarray(u)

    # Total VMEM footprint at this size is well under 1 MiB -> gridless call.
    out_flat = pl.pallas_call(
        partial(_egc_kernel, B=B, Cin=Cin, C=C, P=P, Wh=Wh),
        out_shape=jax.ShapeDtypeStruct((B, C, HW), jnp.float32),
    )(low_flat, xp, u, kp['cpack'], kp['w2aug'], kp['lpack'])

    return out_flat.reshape(B, C, H, W)                 # free reshape back


# ----------------------------------------------------------------------------
# Parameters: raw (PyTorch-like) + kernel-ready (folded / packed) forms
# ----------------------------------------------------------------------------
def init_raw_params(key, ch_in, ch_out):
    P = ch_out  # planes == ch_out in EGCModule
    ks = jax.random.split(key, 20)

    def n(i, shape, s=0.2):
        return s * jax.random.normal(ks[i], shape, jnp.float32)

    return dict(
        # SingleConvLayer: Conv2d(ch_in, ch_out, 3, pad=1) + BatchNorm2d
        w_conv=n(0, (ch_out, ch_in, 3, 3)),
        b_conv=n(1, (ch_out,), 0.1),
        bn_gamma=1.0 + n(2, (ch_out,), 0.1),
        bn_beta=n(3, (ch_out,), 0.1),
        bn_mean=n(4, (ch_out,), 0.1),
        bn_var=jnp.abs(jax.random.normal(ks[5], (ch_out,), jnp.float32)) * 0.5 + 0.5,
        # GCBlock conv_mask: Conv2d(ch_out, 1, 1)
        w_mask=n(6, (ch_out,)),
        b_mask=n(7, (1,), 0.1),
        # channel_add_conv
        w1_add=n(8, (P, ch_out)), b1_add=n(9, (P,), 0.1),
        ln_g_add=1.0 + n(10, (P,), 0.1), ln_b_add=n(11, (P,), 0.1),
        w2_add=n(12, (ch_out, P)), b2_add=n(13, (ch_out,), 0.1),
        # channel_mul_conv
        w1_mul=n(14, (P, ch_out)), b1_mul=n(15, (P,), 0.1),
        ln_g_mul=1.0 + n(16, (P,), 0.1), ln_b_mul=n(17, (P,), 0.1),
        w2_mul=n(18, (ch_out, P)), b2_mul=n(19, (ch_out,), 0.1),
    )


def prepare_kernel_params(raw):
    C, Cin = raw['w_conv'].shape[0], raw['w_conv'].shape[1]
    P = raw['w1_add'].shape[0]
    eps = 1e-5

    scale = raw['bn_gamma'] / jnp.sqrt(raw['bn_var'] + eps)            # (C,)
    bn_b = ((raw['b_conv'] - raw['bn_mean']) * scale
            + raw['bn_beta']).reshape(C, 1)
    # conv weights, tap-major columns [(ky*3+kx)*Cin + cin], BN scale folded in
    wmat = (jnp.transpose(raw['w_conv'], (0, 2, 3, 1)).reshape(C, 9 * Cin)
            * scale[:, None])

    w1t = jnp.concatenate([raw['w1_add'], raw['w1_mul']], axis=0).T    # (C, 2P)
    cpack = jnp.concatenate(
        [wmat, bn_b, raw['w_mask'].reshape(C, 1), w1t], axis=1)        # (C, 9Cin+2+2P)

    lpack = jnp.stack([
        jnp.concatenate([raw['b1_add'], raw['b1_mul']]),
        jnp.concatenate([raw['ln_g_add'], raw['ln_g_mul']]),
        jnp.concatenate([raw['ln_b_add'], raw['ln_b_mul']]),
    ], axis=0)                                                         # (3, 2P)

    z = jnp.zeros((C, P), jnp.float32)
    w2_blk = jnp.block([[raw['w2_add'], z], [z, raw['w2_mul']]])       # (2C, 2P)
    b2 = jnp.concatenate([raw['b2_add'], raw['b2_mul']]).reshape(2 * C, 1)
    w2aug = jnp.concatenate([w2_blk, b2], axis=1)                      # (2C, 2P+1)

    # raw['b_mask'] is intentionally not packed: it is constant over the
    # softmax axis and cancels exactly inside the GC attention softmax.
    return dict(cpack=cpack, lpack=lpack, w2aug=w2aug)


# ----------------------------------------------------------------------------
# Pure-JAX reference (mirrors the PyTorch module, eval-mode BN)
# ----------------------------------------------------------------------------
def ref_forward(low, high, raw):
    eps = 1e-5
    low = low.astype(jnp.float32)
    high = high.astype(jnp.float32)

    conv = jax.lax.conv_general_dilated(
        high, raw['w_conv'], window_strides=(1, 1), padding=((1, 1), (1, 1)),
        dimension_numbers=('NCHW', 'OIHW', 'NCHW'))
    conv = conv + raw['b_conv'][None, :, None, None]
    scale = raw['bn_gamma'] / jnp.sqrt(raw['bn_var'] + eps)
    conv = (conv - raw['bn_mean'][None, :, None, None]) * scale[None, :, None, None] \
        + raw['bn_beta'][None, :, None, None]
    conv = jnp.maximum(conv, 0.0)
    high_up = jnp.repeat(jnp.repeat(conv, 2, axis=2), 2, axis=3)

    fusion = low * high_up
    B, C, H, W = fusion.shape
    x = fusion.reshape(B, C, H * W)

    logits = jnp.einsum('bcs,c->bs', x, raw['w_mask']) + raw['b_mask']
    p = jax.nn.softmax(logits, axis=-1)
    ctx = jnp.einsum('bcs,bs->bc', x, p)

    def branch(w1, b1, g, beta, w2, b2):
        t = ctx @ w1.T + b1
        mu = jnp.mean(t, axis=-1, keepdims=True)
        var = jnp.mean((t - mu) ** 2, axis=-1, keepdims=True)
        t = (t - mu) * jax.lax.rsqrt(var + eps) * g + beta
        t = jnp.maximum(t, 0.0)
        return t @ w2.T + b2

    add_t = branch(raw['w1_add'], raw['b1_add'], raw['ln_g_add'],
                   raw['ln_b_add'], raw['w2_add'], raw['b2_add'])
    mul_t = jax.nn.sigmoid(branch(raw['w1_mul'], raw['b1_mul'], raw['ln_g_mul'],
                                  raw['ln_b_mul'], raw['w2_mul'], raw['b2_mul']))
    out = x * mul_t[:, :, None] + add_t[:, :, None]
    return out.reshape(B, C, H, W)


if __name__ == "__main__":
    key = jax.random.PRNGKey(0)
    ch_in, ch_out = 4, 8
    B, H, W = 2, 16, 16

    k1, k2, k3 = jax.random.split(key, 3)
    low = jax.random.normal(k1, (B, ch_out, H, W), jnp.float32)            # NCHW
    high = jax.random.normal(k2, (B, ch_in, H // 2, W // 2), jnp.float32)  # NCHW

    raw = init_raw_params(k3, ch_in, ch_out)
    kp = prepare_kernel_params(raw)

    out = egc_forward(low, high, kp)
    out = jax.block_until_ready(out)
    assert out.shape == (B, ch_out, H, W)

    ref = jax.block_until_ready(ref_forward(low, high, raw))
    np.testing.assert_allclose(np.asarray(out), np.asarray(ref), rtol=1e-4, atol=1e-4)
    print("KERNEL_OK")
</pallas_src>

<mosaic_0001>
module attributes {stable_mosaic.version = 11 : i64} {
  func.func @_egc_kernel(%arg0: memref<2x8x256xf32, #tpu.memory_space<vmem>>, %arg1: memref<2x4x100xf32, #tpu.memory_space<vmem>>, %arg2: memref<78x256xf32, #tpu.memory_space<vmem>>, %arg3: memref<8x54xf32, #tpu.memory_space<vmem>>, %arg4: memref<16x17xf32, #tpu.memory_space<vmem>>, %arg5: memref<3x16xf32, #tpu.memory_space<vmem>>, %arg6: memref<2x8x256xf32, #tpu.memory_space<vmem>>) attributes {dimension_semantics = [], scalar_prefetch = 0 : i64, scratch_operands = 0 : i64, tpu.core_type = #tpu.core_type<tc>} {
    %c0 = arith.constant 0 : index
    %c0_0 = arith.constant 0 : index
    %0 = vector.load %arg3[%c0, %c0_0] : memref<8x54xf32, #tpu.memory_space<vmem>>, vector<8x54xf32>
    %1 = vector.extract_strided_slice %0 {offsets = [0, 0], sizes = [8, 36], strides = [1, 1]} : vector<8x54xf32> to vector<8x36xf32>
    %2 = vector.extract_strided_slice %0 {offsets = [0, 36], sizes = [8, 1], strides = [1, 1]} : vector<8x54xf32> to vector<8x1xf32>
    %3 = vector.extract_strided_slice %0 {offsets = [0, 37], sizes = [8, 1], strides = [1, 1]} : vector<8x54xf32> to vector<8x1xf32>
    %4 = vector.extract_strided_slice %0 {offsets = [0, 38], sizes = [8, 16], strides = [1, 1]} : vector<8x54xf32> to vector<8x16xf32>
    %c0_1 = arith.constant 0 : index
    %c0_2 = arith.constant 0 : index
    %c0_3 = arith.constant 0 : index
    %5 = vector.load %arg1[%c0_1, %c0_2, %c0_3] : memref<2x4x100xf32, #tpu.memory_space<vmem>>, vector<2x4x100xf32>
    %cst = arith.constant 0.000000e+00 : f32
    %6 = vector.broadcast %cst : f32 to vector<2x8x78xf32>
    %7 = vector.extract_strided_slice %5 {offsets = [0, 0, 0], sizes = [2, 4, 78], strides = [1, 1, 1]} : vector<2x4x100xf32> to vector<2x4x78xf32>
    %8 = vector.extract_strided_slice %1 {offsets = [0, 0], sizes = [8, 1], strides = [1, 1]} : vector<8x36xf32> to vector<8x1xf32>
    %9 = vector.shape_cast %8 : vector<8x1xf32> to vector<1x8x1xf32>
    %10 = vector.extract_strided_slice %7 {offsets = [0, 0, 0], sizes = [2, 1, 78], strides = [1, 1, 1]} : vector<2x4x78xf32> to vector<2x1x78xf32>
    %11 = vector.broadcast %9 : vector<1x8x1xf32> to vector<2x8x78xf32>
    %12 = vector.broadcast %10 : vector<2x1x78xf32> to vector<2x8x78xf32>
    %13 = arith.mulf %11, %12 : vector<2x8x78xf32>
    %14 = arith.addf %6, %13 : vector<2x8x78xf32>
    %15 = vector.extract_strided_slice %1 {offsets = [0, 1], sizes = [8, 1], strides = [1, 1]} : vector<8x36xf32> to vector<8x1xf32>
    %16 = vector.shape_cast %15 : vector<8x1xf32> to vector<1x8x1xf32>
    %17 = vector.extract_strided_slice %7 {offsets = [0, 1, 0], sizes = [2, 1, 78], strides = [1, 1, 1]} : vector<2x4x78xf32> to vector<2x1x78xf32>
    %18 = vector.broadcast %16 : vector<1x8x1xf32> to vector<2x8x78xf32>
    %19 = vector.broadcast %17 : vector<2x1x78xf32> to vector<2x8x78xf32>
    %20 = arith.mulf %18, %19 : vector<2x8x78xf32>
    %21 = arith.addf %14, %20 : vector<2x8x78xf32>
    %22 = vector.extract_strided_slice %1 {offsets = [0, 2], sizes = [8, 1], strides = [1, 1]} : vector<8x36xf32> to vector<8x1xf32>
    %23 = vector.shape_cast %22 : vector<8x1xf32> to vector<1x8x1xf32>
    %24 = vector.extract_strided_slice %7 {offsets = [0, 2, 0], sizes = [2, 1, 78], strides = [1, 1, 1]} : vector<2x4x78xf32> to vector<2x1x78xf32>
    %25 = vector.broadcast %23 : vector<1x8x1xf32> to vector<2x8x78xf32>
    %26 = vector.broadcast %24 : vector<2x1x78xf32> to vector<2x8x78xf32>
    %27 = arith.mulf %25, %26 : vector<2x8x78xf32>
    %28 = arith.addf %21, %27 : vector<2x8x78xf32>
    %29 = vector.extract_strided_slice %1 {offsets = [0, 3], sizes = [8, 1], strides = [1, 1]} : vector<8x36xf32> to vector<8x1xf32>
    %30 = vector.shape_cast %29 : vector<8x1xf32> to vector<1x8x1xf32>
    %31 = vector.extract_strided_slice %7 {offsets = [0, 3, 0], sizes = [2, 1, 78], strides = [1, 1, 1]} : vector<2x4x78xf32> to vector<2x1x78xf32>
    %32 = vector.broadcast %30 : vector<1x8x1xf32> to vector<2x8x78xf32>
    %33 = vector.broadcast %31 : vector<2x1x78xf32> to vector<2x8x78xf32>
    %34 = arith.mulf %32, %33 : vector<2x8x78xf32>
    %35 = arith.addf %28, %34 : vector<2x8x78xf32>
    %36 = vector.extract_strided_slice %5 {offsets = [0, 0, 1], sizes = [2, 4, 78], strides = [1, 1, 1]} : vector<2x4x100xf32> to vector<2x4x78xf32>
    %37 = vector.extract_strided_slice %1 {offsets = [0, 4], sizes = [8, 1], strides = [1, 1]} : vector<8x36xf32> to vector<8x1xf32>
    %38 = vector.shape_cast %37 : vector<8x1xf32> to vector<1x8x1xf32>
    %39 = vector.extract_strided_slice %36 {offsets = [0, 0, 0], sizes = [2, 1, 78], strides = [1, 1, 1]} : vector<2x4x78xf32> to vector<2x1x78xf32>
    %40 = vector.broadcast %38 : vector<1x8x1xf32> to vector<2x8x78xf32>
    %41 = vector.broadcast %39 : vector<2x1x78xf32> to vector<2x8x78xf32>
    %42 = arith.mulf %40, %41 : vector<2x8x78xf32>
    %43 = arith.addf %35, %42 : vector<2x8x78xf32>
    %44 = vector.extract_strided_slice %1 {offsets = [0, 5], sizes = [8, 1], strides = [1, 1]} : vector<8x36xf32> to vector<8x1xf32>
    %45 = vector.shape_cast %44 : vector<8x1xf32> to vector<1x8x1xf32>
    %46 = vector.extract_strided_slice %36 {offsets = [0, 1, 0], sizes = [2, 1, 78], strides = [1, 1, 1]} : vector<2x4x78xf32> to vector<2x1x78xf32>
    %47 = vector.broadcast %45 : vector<1x8x1xf32> to vector<2x8x78xf32>
    %48 = vector.broadcast %46 : vector<2x1x78xf32> to vector<2x8x78xf32>
    %49 = arith.mulf %47, %48 : vector<2x8x78xf32>
    %50 = arith.addf %43, %49 : vector<2x8x78xf32>
    %51 = vector.extract_strided_slice %1 {offsets = [0, 6], sizes = [8, 1], strides = [1, 1]} : vector<8x36xf32> to vector<8x1xf32>
    %52 = vector.shape_cast %51 : vector<8x1xf32> to vector<1x8x1xf32>
    %53 = vector.extract_strided_slice %36 {offsets = [0, 2, 0], sizes = [2, 1, 78], strides = [1, 1, 1]} : vector<2x4x78xf32> to vector<2x1x78xf32>
    %54 = vector.broadcast %52 : vector<1x8x1xf32> to vector<2x8x78xf32>
    %55 = vector.broadcast %53 : vector<2x1x78xf32> to vector<2x8x78xf32>
    %56 = arith.mulf %54, %55 : vector<2x8x78xf32>
    %57 = arith.addf %50, %56 : vector<2x8x78xf32>
    %58 = vector.extract_strided_slice %1 {offsets = [0, 7], sizes = [8, 1], strides = [1, 1]} : vector<8x36xf32> to vector<8x1xf32>
    %59 = vector.shape_cast %58 : vector<8x1xf32> to vector<1x8x1xf32>
    %60 = vector.extract_strided_slice %36 {offsets = [0, 3, 0], sizes = [2, 1, 78], strides = [1, 1, 1]} : vector<2x4x78xf32> to vector<2x1x78xf32>
    %61 = vector.broadcast %59 : vector<1x8x1xf32> to vector<2x8x78xf32>
    %62 = vector.broadcast %60 : vector<2x1x78xf32> to vector<2x8x78xf32>
    %63 = arith.mulf %61, %62 : vector<2x8x78xf32>
    %64 = arith.addf %57, %63 : vector<2x8x78xf32>
    %65 = vector.extract_strided_slice %5 {offsets = [0, 0, 2], sizes = [2, 4, 78], strides = [1, 1, 1]} : vector<2x4x100xf32> to vector<2x4x78xf32>
    %66 = vector.extract_strided_slice %1 {offsets = [0, 8], sizes = [8, 1], strides = [1, 1]} : vector<8x36xf32> to vector<8x1xf32>
    %67 = vector.shape_cast %66 : vector<8x1xf32> to vector<1x8x1xf32>
    %68 = vector.extract_strided_slice %65 {offsets = [0, 0, 0], sizes = [2, 1, 78], strides = [1, 1, 1]} : vector<2x4x78xf32> to vector<2x1x78xf32>
    %69 = vector.broadcast %67 : vector<1x8x1xf32> to vector<2x8x78xf32>
    %70 = vector.broadcast %68 : vector<2x1x78xf32> to vector<2x8x78xf32>
    %71 = arith.mulf %69, %70 : vector<2x8x78xf32>
    %72 = arith.addf %64, %71 : vector<2x8x78xf32>
    %73 = vector.extract_strided_slice %1 {offsets = [0, 9], sizes = [8, 1], strides = [1, 1]} : vector<8x36xf32> to vector<8x1xf32>
    %74 = vector.shape_cast %73 : vector<8x1xf32> to vector<1x8x1xf32>
    %75 = vector.extract_strided_slice %65 {offsets = [0, 1, 0], sizes = [2, 1, 78], strides = [1, 1, 1]} : vector<2x4x78xf32> to vector<2x1x78xf32>
    %76 = vector.broadcast %74 : vector<1x8x1xf32> to vector<2x8x78xf32>
    %77 = vector.broadcast %75 : vector<2x1x78xf32> to vector<2x8x78xf32>
    %78 = arith.mulf %76, %77 : vector<2x8x78xf32>
    %79 = arith.addf %72, %78 : vector<2x8x78xf32>
    %80 = vector.extract_strided_slice %1 {offsets = [0, 10], sizes = [8, 1], strides = [1, 1]} : vector<8x36xf32> to vector<8x1xf32>
    %81 = vector.shape_cast %80 : vector<8x1xf32> to vector<1x8x1xf32>
    %82 = vector.extract_strided_slice %65 {offsets = [0, 2, 0], sizes = [2, 1, 78], strides = [1, 1, 1]} : vector<2x4x78xf32> to vector<2x1x78xf32>
    %83 = vector.broadcast %81 : vector<1x8x1xf32> to vector<2x8x78xf32>
    %84 = vector.broadcast %82 : vector<2x1x78xf32> to vector<2x8x78xf32>
    %85 = arith.mulf %83, %84 : vector<2x8x78xf32>
    %86 = arith.addf %79, %85 : vector<2x8x78xf32>
    %87 = vector.extract_strided_slice %1 {offsets = [0, 11], sizes = [8, 1], strides = [1, 1]} : vector<8x36xf32> to vector<8x1xf32>
    %88 = vector.shape_cast %87 : vector<8x1xf32> to vector<1x8x1xf32>
    %89 = vector.extract_strided_slice %65 {offsets = [0, 3, 0], sizes = [2, 1, 78], strides = [1, 1, 1]} : vector<2x4x78xf32> to vector<2x1x78xf32>
    %90 = vector.broadcast %88 : vector<1x8x1xf32> to vector<2x8x78xf32>
    %91 = vector.broadcast %89 : vector<2x1x78xf32> to vector<2x8x78xf32>
    %92 = arith.mulf %90, %91 : vector<2x8x78xf32>
    %93 = arith.addf %86, %92 : vector<2x8x78xf32>
    %94 = vector.extract_strided_slice %5 {offsets = [0, 0, 10], sizes = [2, 4, 78], strides = [1, 1, 1]} : vector<2x4x100xf32> to vector<2x4x78xf32>
    %95 = vector.extract_strided_slice %1 {offsets = [0, 12], sizes = [8, 1], strides = [1, 1]} : vector<8x36xf32> to vector<8x1xf32>
    %96 = vector.shape_cast %95 : vector<8x1xf32> to vector<1x8x1xf32>
    %97 = vector.extract_strided_slice %94 {offsets = [0, 0, 0], sizes = [2, 1, 78], strides = [1, 1, 1]} : vector<2x4x78xf32> to vector<2x1x78xf32>
    %98 = vector.broadcast %96 : vector<1x8x1xf32> to vector<2x8x78xf32>
    %99 = vector.broadcast %97 : vector<2x1x78xf32> to vector<2x8x78xf32>
    %100 = arith.mulf %98, %99 : vector<2x8x78xf32>
    %101 = arith.addf %93, %100 : vector<2x8x78xf32>
    %102 = vector.extract_strided_slice %1 {offsets = [0, 13], sizes = [8, 1], strides = [1, 1]} : vector<8x36xf32> to vector<8x1xf32>
    %103 = vector.shape_cast %102 : vector<8x1xf32> to vector<1x8x1xf32>
    %104 = vector.extract_strided_slice %94 {offsets = [0, 1, 0], sizes = [2, 1, 78], strides = [1, 1, 1]} : vector<2x4x78xf32> to vector<2x1x78xf32>
    %105 = vector.broadcast %103 : vector<1x8x1xf32> to vector<2x8x78xf32>
    %106 = vector.broadcast %104 : vector<2x1x78xf32> to vector<2x8x78xf32>
    %107 = arith.mulf %105, %106 : vector<2x8x78xf32>
    %108 = arith.addf %101, %107 : vector<2x8x78xf32>
    %109 = vector.extract_strided_slice %1 {offsets = [0, 14], sizes = [8, 1], strides = [1, 1]} : vector<8x36xf32> to vector<8x1xf32>
    %110 = vector.shape_cast %109 : vector<8x1xf32> to vector<1x8x1xf32>
    %111 = vector.extract_strided_slice %94 {offsets = [0, 2, 0], sizes = [2, 1, 78], strides = [1, 1, 1]} : vector<2x4x78xf32> to vector<2x1x78xf32>
    %112 = vector.broadcast %110 : vector<1x8x1xf32> to vector<2x8x78xf32>
    %113 = vector.broadcast %111 : vector<2x1x78xf32> to vector<2x8x78xf32>
    %114 = arith.mulf %112, %113 : vector<2x8x78xf32>
    %115 = arith.addf %108, %114 : vector<2x8x78xf32>
    %116 = vector.extract_strided_slice %1 {offsets = [0, 15], sizes = [8, 1], strides = [1, 1]} : vector<8x36xf32> to vector<8x1xf32>
    %117 = vector.shape_cast %116 : vector<8x1xf32> to vector<1x8x1xf32>
    %118 = vector.extract_strided_slice %94 {offsets = [0, 3, 0], sizes = [2, 1, 78], strides = [1, 1, 1]} : vector<2x4x78xf32> to vector<2x1x78xf32>
    %119 = vector.broadcast %117 : vector<1x8x1xf32> to vector<2x8x78xf32>
    %120 = vector.broadcast %118 : vector<2x1x78xf32> to vector<2x8x78xf32>
    %121 = arith.mulf %119, %120 : vector<2x8x78xf32>
    %122 = arith.addf %115, %121 : vector<2x8x78xf32>
    %123 = vector.extract_strided_slice %5 {offsets = [0, 0, 11], sizes = [2, 4, 78], strides = [1, 1, 1]} : vector<2x4x100xf32> to vector<2x4x78xf32>
    %124 = vector.extract_strided_slice %1 {offsets = [0, 16], sizes = [8, 1], strides = [1, 1]} : vector<8x36xf32> to vector<8x1xf32>
    %125 = vector.shape_cast %124 : vector<8x1xf32> to vector<1x8x1xf32>
    %126 = vector.extract_strided_slice %123 {offsets = [0, 0, 0], sizes = [2, 1, 78], strides = [1, 1, 1]} : vector<2x4x78xf32> to vector<2x1x78xf32>
    %127 = vector.broadcast %125 : vector<1x8x1xf32> to vector<2x8x78xf32>
    %128 = vector.broadcast %126 : vector<2x1x78xf32> to vector<2x8x78xf32>
    %129 = arith.mulf %127, %128 : vector<2x8x78xf32>
    %130 = arith.addf %122, %129 : vector<2x8x78xf32>
    %131 = vector.extract_strided_slice %1 {offsets = [0, 17], sizes = [8, 1], strides = [1, 1]} : vector<8x36xf32> to vector<8x1xf32>
    %132 = vector.shape_cast %131 : vector<8x1xf32> to vector<1x8x1xf32>
    %133 = vector.extract_strided_slice %123 {offsets = [0, 1, 0], sizes = [2, 1, 78], strides = [1, 1, 1]} : vector<2x4x78xf32> to vector<2x1x78xf32>
    %134 = vector.broadcast %132 : vector<1x8x1xf32> to vector<2x8x78xf32>
    %135 = vector.broadcast %133 : vector<2x1x78xf32> to vector<2x8x78xf32>
    %136 = arith.mulf %134, %135 : vector<2x8x78xf32>
    %137 = arith.addf %130, %136 : vector<2x8x78xf32>
    %138 = vector.extract_strided_slice %1 {offsets = [0, 18], sizes = [8, 1], strides = [1, 1]} : vector<8x36xf32> to vector<8x1xf32>
    %139 = vector.shape_cast %138 : vector<8x1xf32> to vector<1x8x1xf32>
    %140 = vector.extract_strided_slice %123 {offsets = [0, 2, 0], sizes = [2, 1, 78], strides = [1, 1, 1]} : vector<2x4x78xf32> to vector<2x1x78xf32>
    %141 = vector.broadcast %139 : vector<1x8x1xf32> to vector<2x8x78xf32>
    %142 = vector.broadcast %140 : vector<2x1x78xf32> to vector<2x8x78xf32>
    %143 = arith.mulf %141, %142 : vector<2x8x78xf32>
    %144 = arith.addf %137, %143 : vector<2x8x78xf32>
    %145 = vector.extract_strided_slice %1 {offsets = [0, 19], sizes = [8, 1], strides = [1, 1]} : vector<8x36xf32> to vector<8x1xf32>
    %146 = vector.shape_cast %145 : vector<8x1xf32> to vector<1x8x1xf32>
    %147 = vector.extract_strided_slice %123 {offsets = [0, 3, 0], sizes = [2, 1, 78], strides = [1, 1, 1]} : vector<2x4x78xf32> to vector<2x1x78xf32>
    %148 = vector.broadcast %146 : vector<1x8x1xf32> to vector<2x8x78xf32>
    %149 = vector.broadcast %147 : vector<2x1x78xf32> to vector<2x8x78xf32>
    %150 = arith.mulf %148, %149 : vector<2x8x78xf32>
    %151 = arith.addf %144, %150 : vector<2x8x78xf32>
    %152 = vector.extract_strided_slice %5 {offsets = [0, 0, 12], sizes = [2, 4, 78], strides = [1, 1, 1]} : vector<2x4x100xf32> to vector<2x4x78xf32>
    %153 = vector.extract_strided_slice %1 {offsets = [0, 20], sizes = [8, 1], strides = [1, 1]} : vector<8x36xf32> to vector<8x1xf32>
    %154 = vector.shape_cast %153 : vector<8x1xf32> to vector<1x8x1xf32>
    %155 = vector.extract_strided_slice %152 {offsets = [0, 0, 0], sizes = [2, 1, 78], strides = [1, 1, 1]} : vector<2x4x78xf32> to vector<2x1x78xf32>
    %156 = vector.broadcast %154 : vector<1x8x1xf32> to vector<2x8x78xf32>
    %157 = vector.broadcast %155 : vector<2x1x78xf32> to vector<2x8x78xf32>
    %158 = arith.mulf %156, %157 : vector<2x8x78xf32>
    %159 = arith.addf %151, %158 : vector<2x8x78xf32>
    %160 = vector.extract_strided_slice %1 {offsets = [0, 21], sizes = [8, 1], strides = [1, 1]} : vector<8x36xf32> to vector<8x1xf32>
    %161 = vector.shape_cast %160 : vector<8x1xf32> to vector<1x8x1xf32>
    %162 = vector.extract_strided_slice %152 {offsets = [0, 1, 0], sizes = [2, 1, 78], strides = [1, 1, 1]} : vector<2x4x78xf32> to vector<2x1x78xf32>
    %163 = vector.broadcast %161 : vector<1x8x1xf32> to vector<2x8x78xf32>
    %164 = vector.broadcast %162 : vector<2x1x78xf32> to vector<2x8x78xf32>
    %165 = arith.mulf %163, %164 : vector<2x8x78xf32>
    %166 = arith.addf %159, %165 : vector<2x8x78xf32>
    %167 = vector.extract_strided_slice %1 {offsets = [0, 22], sizes = [8, 1], strides = [1, 1]} : vector<8x36xf32> to vector<8x1xf32>
    %168 = vector.shape_cast %167 : vector<8x1xf32> to vector<1x8x1xf32>
    %169 = vector.extract_strided_slice %152 {offsets = [0, 2, 0], sizes = [2, 1, 78], strides = [1, 1, 1]} : vector<2x4x78xf32> to vector<2x1x78xf32>
    %170 = vector.broadcast %168 : vector<1x8x1xf32> to vector<2x8x78xf32>
    %171 = vector.broadcast %169 : vector<2x1x78xf32> to vector<2x8x78xf32>
    %172 = arith.mulf %170, %171 : vector<2x8x78xf32>
    %173 = arith.addf %166, %172 : vector<2x8x78xf32>
    %174 = vector.extract_strided_slice %1 {offsets = [0, 23], sizes = [8, 1], strides = [1, 1]} : vector<8x36xf32> to vector<8x1xf32>
    %175 = vector.shape_cast %174 : vector<8x1xf32> to vector<1x8x1xf32>
    %176 = vector.extract_strided_slice %152 {offsets = [0, 3, 0], sizes = [2, 1, 78], strides = [1, 1, 1]} : vector<2x4x78xf32> to vector<2x1x78xf32>
    %177 = vector.broadcast %175 : vector<1x8x1xf32> to vector<2x8x78xf32>
    %178 = vector.broadcast %176 : vector<2x1x78xf32> to vector<2x8x78xf32>
    %179 = arith.mulf %177, %178 : vector<2x8x78xf32>
    %180 = arith.addf %173, %179 : vector<2x8x78xf32>
    %181 = vector.extract_strided_slice %5 {offsets = [0, 0, 20], sizes = [2, 4, 78], strides = [1, 1, 1]} : vector<2x4x100xf32> to vector<2x4x78xf32>
    %182 = vector.extract_strided_slice %1 {offsets = [0, 24], sizes = [8, 1], strides = [1, 1]} : vector<8x36xf32> to vector<8x1xf32>
    %183 = vector.shape_cast %182 : vector<8x1xf32> to vector<1x8x1xf32>
    %184 = vector.extract_strided_slice %181 {offsets = [0, 0, 0], sizes = [2, 1, 78], strides = [1, 1, 1]} : vector<2x4x78xf32> to vector<2x1x78xf32>
    %185 = vector.broadcast %183 : vector<1x8x1xf32> to vector<2x8x78xf32>
    %186 = vector.broadcast %184 : vector<2x1x78xf32> to vector<2x8x78xf32>
    %187 = arith.mulf %185, %186 : vector<2x8x78xf32>
    %188 = arith.addf %180, %187 : vector<2x8x78xf32>
    %189 = vector.extract_strided_slice %1 {offsets = [0, 25], sizes = [8, 1], strides = [1, 1]} : vector<8x36xf32> to vector<8x1xf32>
    %190 = vector.shape_cast %189 : vector<8x1xf32> to vector<1x8x1xf32>
    %191 = vector.extract_strided_slice %181 {offsets = [0, 1, 0], sizes = [2, 1, 78], strides = [1, 1, 1]} : vector<2x4x78xf32> to vector<2x1x78xf32>
    %192 = vector.broadcast %190 : vector<1x8x1xf32> to vector<2x8x78xf32>
    %193 = vector.broadcast %191 : vector<2x1x78xf32> to vector<2x8x78xf32>
    %194 = arith.mulf %192, %193 : vector<2x8x78xf32>
    %195 = arith.addf %188, %194 : vector<2x8x78xf32>
    %196 = vector.extract_strided_slice %1 {offsets = [0, 26], sizes = [8, 1], strides = [1, 1]} : vector<8x36xf32> to vector<8x1xf32>
    %197 = vector.shape_cast %196 : vector<8x1xf32> to vector<1x8x1xf32>
    %198 = vector.extract_strided_slice %181 {offsets = [0, 2, 0], sizes = [2, 1, 78], strides = [1, 1, 1]} : vector<2x4x78xf32> to vector<2x1x78xf32>
    %199 = vector.broadcast %197 : vector<1x8x1xf32> to vector<2x8x78xf32>
    %200 = vector.broadcast %198 : vector<2x1x78xf32> to vector<2x8x78xf32>
    %201 = arith.mulf %199, %200 : vector<2x8x78xf32>
    %202 = arith.addf %195, %201 : vector<2x8x78xf32>
    %203 = vector.extract_strided_slice %1 {offsets = [0, 27], sizes = [8, 1], strides = [1, 1]} : vector<8x36xf32> to vector<8x1xf32>
    %204 = vector.shape_cast %203 : vector<8x1xf32> to vector<1x8x1xf32>
    %205 = vector.extract_strided_slice %181 {offsets = [0, 3, 0], sizes = [2, 1, 78], strides = [1, 1, 1]} : vector<2x4x78xf32> to vector<2x1x78xf32>
    %206 = vector.broadcast %204 : vector<1x8x1xf32> to vector<2x8x78xf32>
    %207 = vector.broadcast %205 : vector<2x1x78xf32> to vector<2x8x78xf32>
    %208 = arith.mulf %206, %207 : vector<2x8x78xf32>
    %209 = arith.addf %202, %208 : vector<2x8x78xf32>
    %210 = vector.extract_strided_slice %5 {offsets = [0, 0, 21], sizes = [2, 4, 78], strides = [1, 1, 1]} : vector<2x4x100xf32> to vector<2x4x78xf32>
    %211 = vector.extract_strided_slice %1 {offsets = [0, 28], sizes = [8, 1], strides = [1, 1]} : vector<8x36xf32> to vector<8x1xf32>
    %212 = vector.shape_cast %211 : vector<8x1xf32> to vector<1x8x1xf32>
    %213 = vector.extract_strided_slice %210 {offsets = [0, 0, 0], sizes = [2, 1, 78], strides = [1, 1, 1]} : vector<2x4x78xf32> to vector<2x1x78xf32>
    %214 = vector.broadcast %212 : vector<1x8x1xf32> to vector<2x8x78xf32>
    %215 = vector.broadcast %213 : vector<2x1x78xf32> to vector<2x8x78xf32>
    %216 = arith.mulf %214, %215 : vector<2x8x78xf32>
    %217 = arith.addf %209, %216 : vector<2x8x78xf32>
    %218 = vector.extract_strided_slice %1 {offsets = [0, 29], sizes = [8, 1], strides = [1, 1]} : vector<8x36xf32> to vector<8x1xf32>
    %219 = vector.shape_cast %218 : vector<8x1xf32> to vector<1x8x1xf32>
    %220 = vector.extract_strided_slice %210 {offsets = [0, 1, 0], sizes = [2, 1, 78], strides = [1, 1, 1]} : vector<2x4x78xf32> to vector<2x1x78xf32>
    %221 = vector.broadcast %219 : vector<1x8x1xf32> to vector<2x8x78xf32>
    %222 = vector.broadcast %220 : vector<2x1x78xf32> to vector<2x8x78xf32>
    %223 = arith.mulf %221, %222 : vector<2x8x78xf32>
    %224 = arith.addf %217, %223 : vector<2x8x78xf32>
    %225 = vector.extract_strided_slice %1 {offsets = [0, 30], sizes = [8, 1], strides = [1, 1]} : vector<8x36xf32> to vector<8x1xf32>
    %226 = vector.shape_cast %225 : vector<8x1xf32> to vector<1x8x1xf32>
    %227 = vector.extract_strided_slice %210 {offsets = [0, 2, 0], sizes = [2, 1, 78], strides = [1, 1, 1]} : vector<2x4x78xf32> to vector<2x1x78xf32>
    %228 = vector.broadcast %226 : vector<1x8x1xf32> to vector<2x8x78xf32>
    %229 = vector.broadcast %227 : vector<2x1x78xf32> to vector<2x8x78xf32>
    %230 = arith.mulf %228, %229 : vector<2x8x78xf32>
    %231 = arith.addf %224, %230 : vector<2x8x78xf32>
    %232 = vector.extract_strided_slice %1 {offsets = [0, 31], sizes = [8, 1], strides = [1, 1]} : vector<8x36xf32> to vector<8x1xf32>
    %233 = vector.shape_cast %232 : vector<8x1xf32> to vector<1x8x1xf32>
    %234 = vector.extract_strided_slice %210 {offsets = [0, 3, 0], sizes = [2, 1, 78], strides = [1, 1, 1]} : vector<2x4x78xf32> to vector<2x1x78xf32>
    %235 = vector.broadcast %233 : vector<1x8x1xf32> to vector<2x8x78xf32>
    %236 = vector.broadcast %234 : vector<2x1x78xf32> to vector<2x8x78xf32>
    %237 = arith.mulf %235, %236 : vector<2x8x78xf32>
    %238 = arith.addf %231, %237 : vector<2x8x78xf32>
    %239 = vector.extract_strided_slice %5 {offsets = [0, 0, 22], sizes = [2, 4, 78], strides = [1, 1, 1]} : vector<2x4x100xf32> to vector<2x4x78xf32>
    %240 = vector.extract_strided_slice %1 {offsets = [0, 32], sizes = [8, 1], strides = [1, 1]} : vector<8x36xf32> to vector<8x1xf32>
    %241 = vector.shape_cast %240 : vector<8x1xf32> to vector<1x8x1xf32>
    %242 = vector.extract_strided_slice %239 {offsets = [0, 0, 0], sizes = [2, 1, 78], strides = [1, 1, 1]} : vector<2x4x78xf32> to vector<2x1x78xf32>
    %243 = vector.broadcast %241 : vector<1x8x1xf32> to vector<2x8x78xf32>
    %244 = vector.broadcast %242 : vector<2x1x78xf32> to vector<2x8x78xf32>
    %245 = arith.mulf %243, %244 : vector<2x8x78xf32>
    %246 = arith.addf %238, %245 : vector<2x8x78xf32>
    %247 = vector.extract_strided_slice %1 {offsets = [0, 33], sizes = [8, 1], strides = [1, 1]} : vector<8x36xf32> to vector<8x1xf32>
    %248 = vector.shape_cast %247 : vector<8x1xf32> to vector<1x8x1xf32>
    %249 = vector.extract_strided_slice %239 {offsets = [0, 1, 0], sizes = [2, 1, 78], strides = [1, 1, 1]} : vector<2x4x78xf32> to vector<2x1x78xf32>
    %250 = vector.broadcast %248 : vector<1x8x1xf32> to vector<2x8x78xf32>
    %251 = vector.broadcast %249 : vector<2x1x78xf32> to vector<2x8x78xf32>
    %252 = arith.mulf %250, %251 : vector<2x8x78xf32>
    %253 = arith.addf %246, %252 : vector<2x8x78xf32>
    %254 = vector.extract_strided_slice %1 {offsets = [0, 34], sizes = [8, 1], strides = [1, 1]} : vector<8x36xf32> to vector<8x1xf32>
    %255 = vector.shape_cast %254 : vector<8x1xf32> to vector<1x8x1xf32>
    %256 = vector.extract_strided_slice %239 {offsets = [0, 2, 0], sizes = [2, 1, 78], strides = [1, 1, 1]} : vector<2x4x78xf32> to vector<2x1x78xf32>
    %257 = vector.broadcast %255 : vector<1x8x1xf32> to vector<2x8x78xf32>
    %258 = vector.broadcast %256 : vector<2x1x78xf32> to vector<2x8x78xf32>
    %259 = arith.mulf %257, %258 : vector<2x8x78xf32>
    %260 = arith.addf %253, %259 : vector<2x8x78xf32>
    %261 = vector.extract_strided_slice %1 {offsets = [0, 35], sizes = [8, 1], strides = [1, 1]} : vector<8x36xf32> to vector<8x1xf32>
    %262 = vector.shape_cast %261 : vector<8x1xf32> to vector<1x8x1xf32>
    %263 = vector.extract_strided_slice %239 {offsets = [0, 3, 0], sizes = [2, 1, 78], strides = [1, 1, 1]} : vector<2x4x78xf32> to vector<2x1x78xf32>
    %264 = vector.broadcast %262 : vector<1x8x1xf32> to vector<2x8x78xf32>
    %265 = vector.broadcast %263 : vector<2x1x78xf32> to vector<2x8x78xf32>
    %266 = arith.mulf %264, %265 : vector<2x8x78xf32>
    %267 = arith.addf %260, %266 : vector<2x8x78xf32>
    %268 = vector.shape_cast %267 : vector<2x8x78xf32> to vector<16x78xf32>
    %c0_4 = arith.constant 0 : index
    %c0_5 = arith.constant 0 : index
    %269 = vector.load %arg2[%c0_4, %c0_5] : memref<78x256xf32, #tpu.memory_space<vmem>>, vector<78x256xf32>
    %cst_6 = arith.constant dense<0.000000e+00> : vector<16x256xf32>
    %270 = tpu.matmul %268, %269, %cst_6 {dimension_numbers = #tpu.dot_dimension_numbers<[1], [0], [0], [1], [0, 0, 1, 1], [], []>} : vector<16x78xf32>, vector<78x256xf32>, vector<16x256xf32> -> vector<16x256xf32>
    %271 = vector.shape_cast %270 : vector<16x256xf32> to vector<2x8x256xf32>
    %272 = vector.shape_cast %2 : vector<8x1xf32> to vector<1x8x1xf32>
    %273 = vector.broadcast %272 : vector<1x8x1xf32> to vector<2x8x256xf32>
    %274 = arith.addf %271, %273 : vector<2x8x256xf32>
    %cst_7 = arith.constant 0.000000e+00 : f32
    %275 = vector.broadcast %cst_7 : f32 to vector<2x8x256xf32>
    %276 = arith.maximumf %274, %275 : vector<2x8x256xf32>
    %c0_8 = arith.constant 0 : index
    %c0_9 = arith.constant 0 : index
    %c0_10 = arith.constant 0 : index
    %277 = vector.load %arg0[%c0_8, %c0_9, %c0_10] : memref<2x8x256xf32, #tpu.memory_space<vmem>>, vector<2x8x256xf32>
    %278 = arith.mulf %277, %276 : vector<2x8x256xf32>
    %279 = vector.shape_cast %3 : vector<8x1xf32> to vector<1x8x1xf32>
    %280 = vector.broadcast %279 : vector<1x8x1xf32> to vector<2x8x256xf32>
    %281 = arith.mulf %278, %280 : vector<2x8x256xf32>
    %cst_11 = arith.constant dense<0.000000e+00> : vector<2x256xf32>
    %282 = vector.multi_reduction <add>, %281, %cst_11 [1] : vector<2x8x256xf32> to vector<2x256xf32>
    %283 = vector.shape_cast %282 : vector<2x256xf32> to vector<2x1x256xf32>
    %cst_12 = arith.constant dense<0xFF800000> : vector<2x1xf32>
    %284 = vector.multi_reduction <maximumf>, %283, %cst_12 [2] : vector<2x1x256xf32> to vector<2x1xf32>
    %285 = vector.shape_cast %284 : vector<2x1xf32> to vector<2x1x1xf32>
    %286 = vector.broadcast %285 : vector<2x1x1xf32> to vector<2x1x256xf32>
    %287 = arith.subf %283, %286 : vector<2x1x256xf32>
    %288 = math.exp %287 : vector<2x1x256xf32>
    %cst_13 = arith.constant dense<0.000000e+00> : vector<2x1xf32>
    %289 = vector.multi_reduction <add>, %288, %cst_13 [2] : vector<2x1x256xf32> to vector<2x1xf32>
    %290 = vector.shape_cast %289 : vector<2x1xf32> to vector<2x1x1xf32>
    %cst_14 = arith.constant 1.000000e+00 : f32
    %291 = vector.broadcast %cst_14 : f32 to vector<2x1x1xf32>
    %292 = arith.divf %291, %290 : vector<2x1x1xf32>
    %293 = vector.broadcast %288 : vector<2x1x256xf32> to vector<2x8x256xf32>
    %294 = arith.mulf %278, %293 : vector<2x8x256xf32>
    %cst_15 = arith.constant dense<0.000000e+00> : vector<2x8xf32>
    %295 = vector.multi_reduction <add>, %294, %cst_15 [2] : vector<2x8x256xf32> to vector<2x8xf32>
    %296 = vector.shape_cast %295 : vector<2x8xf32> to vector<2x8x1xf32>
    %297 = vector.broadcast %292 : vector<2x1x1xf32> to vector<2x8x1xf32>
    %298 = arith.mulf %296, %297 : vector<2x8x1xf32>
    %c0_16 = arith.constant 0 : index
    %c0_17 = arith.constant 0 : index
    %299 = vector.load %arg5[%c0_16, %c0_17] : memref<3x16xf32, #tpu.memory_space<vmem>>, vector<3x16xf32>
    %300 = vector.extract_strided_slice %299 {offsets = [0, 0], sizes = [1, 16], strides = [1, 1]} : vector<3x16xf32> to vector<1x16xf32>
    %301 = vector.extract_strided_slice %299 {offsets = [1, 0], sizes = [1, 16], strides = [1, 1]} : vector<3x16xf32> to vector<1x16xf32>
    %302 = vector.extract_strided_slice %299 {offsets = [2, 0], sizes = [1, 16], strides = [1, 1]} : vector<3x16xf32> to vector<1x16xf32>
    %303 = vector.shape_cast %4 : vector<8x16xf32> to vector<1x8x16xf32>
    %304 = vector.broadcast %303 : vector<1x8x16xf32> to vector<2x8x16xf32>
    %305 = vector.broadcast %298 : vector<2x8x1xf32> to vector<2x8x16xf32>
    %306 = arith.mulf %304, %305 : vector<2x8x16xf32>
    %cst_18 = arith.constant dense<0.000000e+00> : vector<2x16xf32>
    %307 = vector.multi_reduction <add>, %306, %cst_18 [1] : vector<2x8x16xf32> to vector<2x16xf32>
    %308 = vector.shape_cast %307 : vector<2x16xf32> to vector<2x1x16xf32>
    %309 = vector.shape_cast %300 : vector<1x16xf32> to vector<1x1x16xf32>
    %310 = vector.broadcast %309 : vector<1x1x16xf32> to vector<2x1x16xf32>
    %311 = arith.addf %308, %310 : vector<2x1x16xf32>
    %312 = vector.extract_strided_slice %311 {offsets = [0, 0, 0], sizes = [2, 1, 8], strides = [1, 1, 1]} : vector<2x1x16xf32> to vector<2x1x8xf32>
    %cst_19 = arith.constant dense<0.000000e+00> : vector<2x1xf32>
    %313 = vector.multi_reduction <add>, %312, %cst_19 [2] : vector<2x1x8xf32> to vector<2x1xf32>
    %314 = vector.shape_cast %313 : vector<2x1xf32> to vector<2x1x1xf32>
    %cst_20 = arith.constant 8.000000e+00 : f32
    %315 = vector.broadcast %cst_20 : f32 to vector<2x1x1xf32>
    %316 = arith.divf %314, %315 : vector<2x1x1xf32>
    %317 = vector.broadcast %316 : vector<2x1x1xf32> to vector<2x1x8xf32>
    %318 = arith.subf %312, %317 : vector<2x1x8xf32>
    %319 = arith.mulf %318, %318 : vector<2x1x8xf32>
    %cst_21 = arith.constant dense<0.000000e+00> : vector<2x1xf32>
    %320 = vector.multi_reduction <add>, %319, %cst_21 [2] : vector<2x1x8xf32> to vector<2x1xf32>
    %321 = vector.shape_cast %320 : vector<2x1xf32> to vector<2x1x1xf32>
    %cst_22 = arith.constant 8.000000e+00 : f32
    %322 = vector.broadcast %cst_22 : f32 to vector<2x1x1xf32>
    %323 = arith.divf %321, %322 : vector<2x1x1xf32>
    %324 = vector.broadcast %316 : vector<2x1x1xf32> to vector<2x1x8xf32>
    %325 = arith.subf %312, %324 : vector<2x1x8xf32>
    %cst_23 = arith.constant 9.99999974E-6 : f32
    %326 = vector.broadcast %cst_23 : f32 to vector<2x1x1xf32>
    %327 = arith.addf %323, %326 : vector<2x1x1xf32>
    %328 = math.rsqrt %327 : vector<2x1x1xf32>
    %329 = vector.broadcast %328 : vector<2x1x1xf32> to vector<2x1x8xf32>
    %330 = arith.mulf %325, %329 : vector<2x1x8xf32>
    %331 = vector.extract_strided_slice %311 {offsets = [0, 0, 8], sizes = [2, 1, 8], strides = [1, 1, 1]} : vector<2x1x16xf32> to vector<2x1x8xf32>
    %cst_24 = arith.constant dense<0.000000e+00> : vector<2x1xf32>
    %332 = vector.multi_reduction <add>, %331, %cst_24 [2] : vector<2x1x8xf32> to vector<2x1xf32>
    %333 = vector.shape_cast %332 : vector<2x1xf32> to vector<2x1x1xf32>
    %cst_25 = arith.constant 8.000000e+00 : f32
    %334 = vector.broadcast %cst_25 : f32 to vector<2x1x1xf32>
    %335 = arith.divf %333, %334 : vector<2x1x1xf32>
    %336 = vector.broadcast %335 : vector<2x1x1xf32> to vector<2x1x8xf32>
    %337 = arith.subf %331, %336 : vector<2x1x8xf32>
    %338 = arith.mulf %337, %337 : vector<2x1x8xf32>
    %cst_26 = arith.constant dense<0.000000e+00> : vector<2x1xf32>
    %339 = vector.multi_reduction <add>, %338, %cst_26 [2] : vector<2x1x8xf32> to vector<2x1xf32>
    %340 = vector.shape_cast %339 : vector<2x1xf32> to vector<2x1x1xf32>
    %cst_27 = arith.constant 8.000000e+00 : f32
    %341 = vector.broadcast %cst_27 : f32 to vector<2x1x1xf32>
    %342 = arith.divf %340, %341 : vector<2x1x1xf32>
    %343 = vector.broadcast %335 : vector<2x1x1xf32> to vector<2x1x8xf32>
    %344 = arith.subf %331, %343 : vector<2x1x8xf32>
    %cst_28 = arith.constant 9.99999974E-6 : f32
    %345 = vector.broadcast %cst_28 : f32 to vector<2x1x1xf32>
    %346 = arith.addf %342, %345 : vector<2x1x1xf32>
    %347 = math.rsqrt %346 : vector<2x1x1xf32>
    %348 = vector.broadcast %347 : vector<2x1x1xf32> to vector<2x1x8xf32>
    %349 = arith.mulf %344, %348 : vector<2x1x8xf32>
    %350 = tpu.concatenate %330, %349 in 2 : vector<2x1x8xf32>, vector<2x1x8xf32> -> vector<2x1x16xf32>
    %351 = vector.shape_cast %301 : vector<1x16xf32> to vector<1x1x16xf32>
    %352 = vector.broadcast %351 : vector<1x1x16xf32> to vector<2x1x16xf32>
    %353 = arith.mulf %350, %352 : vector<2x1x16xf32>
    %354 = vector.shape_cast %302 : vector<1x16xf32> to vector<1x1x16xf32>
    %355 = vector.broadcast %354 : vector<1x1x16xf32> to vector<2x1x16xf32>
    %356 = arith.addf %353, %355 : vector<2x1x16xf32>
    %cst_29 = arith.constant 0.000000e+00 : f32
    %357 = vector.broadcast %cst_29 : f32 to vector<2x1x16xf32>
    %358 = arith.maximumf %356, %357 : vector<2x1x16xf32>
    %c0_30 = arith.constant 0 : index
    %c0_31 = arith.constant 0 : index
    %359 = vector.load %arg4[%c0_30, %c0_31] : memref<16x17xf32, #tpu.memory_space<vmem>>, vector<16x17xf32>
    %360 = vector.extract_strided_slice %359 {offsets = [0, 0], sizes = [16, 16], strides = [1, 1]} : vector<16x17xf32> to vector<16x16xf32>
    %361 = vector.shape_cast %360 : vector<16x16xf32> to vector<1x16x16xf32>
    %362 = vector.broadcast %361 : vector<1x16x16xf32> to vector<2x16x16xf32>
    %363 = vector.broadcast %358 : vector<2x1x16xf32> to vector<2x16x16xf32>
    %364 = arith.mulf %362, %363 : vector<2x16x16xf32>
    %cst_32 = arith.constant dense<0.000000e+00> : vector<2x16xf32>
    %365 = vector.multi_reduction <add>, %364, %cst_32 [2] : vector<2x16x16xf32> to vector<2x16xf32>
    %366 = vector.shape_cast %365 : vector<2x16xf32> to vector<2x16x1xf32>
    %367 = vector.extract_strided_slice %359 {offsets = [0, 16], sizes = [16, 1], strides = [1, 1]} : vector<16x17xf32> to vector<16x1xf32>
    %368 = vector.shape_cast %367 : vector<16x1xf32> to vector<1x16x1xf32>
    %369 = vector.broadcast %368 : vector<1x16x1xf32> to vector<2x16x1xf32>
    %370 = arith.addf %366, %369 : vector<2x16x1xf32>
    %371 = vector.extract_strided_slice %370 {offsets = [0, 0, 0], sizes = [2, 8, 1], strides = [1, 1, 1]} : vector<2x16x1xf32> to vector<2x8x1xf32>
    %372 = vector.extract_strided_slice %370 {offsets = [0, 8, 0], sizes = [2, 8, 1], strides = [1, 1, 1]} : vector<2x16x1xf32> to vector<2x8x1xf32>
    %373 = arith.negf %372 : vector<2x8x1xf32>
    %374 = math.exp %373 : vector<2x8x1xf32>
    %cst_33 = arith.constant 1.000000e+00 : f32
    %375 = vector.broadcast %cst_33 : f32 to vector<2x8x1xf32>
    %376 = arith.addf %375, %374 : vector<2x8x1xf32>
    %377 = arith.divf %375, %376 : vector<2x8x1xf32>
    %378 = vector.broadcast %377 : vector<2x8x1xf32> to vector<2x8x256xf32>
    %379 = arith.mulf %278, %378 : vector<2x8x256xf32>
    %380 = vector.broadcast %371 : vector<2x8x1xf32> to vector<2x8x256xf32>
    %381 = arith.addf %379, %380 : vector<2x8x256xf32>
    %c0_34 = arith.constant 0 : index
    %c0_35 = arith.constant 0 : index
    %c0_36 = arith.constant 0 : index
    %382 = vector.load %arg6[%c0_34, %c0_35, %c0_36] : memref<2x8x256xf32, #tpu.memory_space<vmem>>, vector<2x8x256xf32>
    tpu.vector_store %arg6[%c0_34, %c0_35, %c0_36], %381 {strides = array<i32>} : memref<2x8x256xf32, #tpu.memory_space<vmem>>, vector<2x8x256xf32>,
    return
  }
}

</mosaic_0001>

<llo_original>
// kernel: egc_forward.1
$region0: #{egc_forward.1}
  #allocation0 [shape = 'u32[]', space=smem, size = 0x4, offset = 0x4, fixed_abs, tag = 'smem constant byte address 0x4 - core index']
  #allocation1 [shape = 'u32[144,128]{1,0:T(1,128)}', space=vmem, size = 0x12000, scoped, tag = 'internal scratch']
  %s0 = inlined_call_operand.vmem [shape: f32[2,8,256], index: 0, kind: input, shape index: {}]
  %s1 = inlined_call_operand.vmem [shape: f32[2,4,100], index: 1, kind: input, shape index: {}]
  %s2 = inlined_call_operand.vmem [shape: f32[78,256], index: 2, kind: input, shape index: {}]
  %s3 = inlined_call_operand.vmem [shape: f32[8,54], index: 3, kind: input, shape index: {}]
  %s4 = inlined_call_operand.vmem [shape: f32[16,17], index: 4, kind: input, shape index: {}]
  %s5 = inlined_call_operand.vmem [shape: f32[3,16], index: 5, kind: input, shape index: {}]
  %s6 = inlined_call_operand.vmem [shape: f32[2,8,256], index: 6, kind: output, shape index: {}]
  %s7 = sld [smem:[#allocation0]]
  $region34: #{egc_forward.1} parent=0
    _
  %s9 = ssub.s32 1, %s7
  %s10 = scalar_select 0, %s9, %s7
  // Predicated region
  $region2: #{egc_forward.1} parent=0 // pred_check
    _
  $region3: #{egc_forward.1} parent=0 // pred_check_branch
    %12 = sbr.rel (0) target = $region5
  $region4: #{egc_forward.1} parent=0 // pred_region
    _
  $region5: #{egc_forward.1} parent=0 // pred_fallthru
    _
  // Predicated region
  $region6: #{egc_forward.1} parent=0 // pred_check
    _
  $region7: #{egc_forward.1} parent=0 // pred_check_branch
    %14 = sbr.rel (0) target = $region9
  $region8: #{egc_forward.1} parent=0 // pred_region
    _
  $region9: #{egc_forward.1} parent=0 // pred_fallthru
    _
  // Predicated region
  $region10: #{egc_forward.1} parent=0 // pred_check
    _
  $region11: #{egc_forward.1} parent=0 // pred_check_branch
    %16 = sbr.rel (0) target = $region13
  $region12: #{egc_forward.1} parent=0 // pred_region
    _
  $region13: #{egc_forward.1} parent=0 // pred_fallthru
    _
  // Predicated region
  $region14: #{egc_forward.1} parent=0 // pred_check
    _
  $region15: #{egc_forward.1} parent=0 // pred_check_branch
    %18 = sbr.rel (0) target = $region17
  $region16: #{egc_forward.1} parent=0 // pred_region
    _
  $region17: #{egc_forward.1} parent=0 // pred_fallthru
    _
  // Predicated region
  $region18: #{egc_forward.1} parent=0 // pred_check
    _
  $region19: #{egc_forward.1} parent=0 // pred_check_branch
    %20 = sbr.rel (0) target = $region21
  $region20: #{egc_forward.1} parent=0 // pred_region
    _
  $region21: #{egc_forward.1} parent=0 // pred_fallthru
    _
  // Predicated region
  $region22: #{egc_forward.1} parent=0 // pred_check
    _
  $region23: #{egc_forward.1} parent=0 // pred_check_branch
    %22 = sbr.rel (0) target = $region25
  $region24: #{egc_forward.1} parent=0 // pred_region
    _
  $region25: #{egc_forward.1} parent=0 // pred_fallthru
    _
  %v23 = vld [vmem:[%s3] sm:$0xff]
  %v24 = vld [vmem:[%s1] sm:$0xf]
  %v25 = vld [vmem:[%s1 + $0x4] sm:$0xf]
  %27 = vset.pattern.permute.xlu0 0
  %28 = vperm.xlu0 %27, %v23
  %v29 = vpop.permute.xlu0 %28
  %v31 = vlaneseq
  %v32 = vshrl.u32 %v31, 7
  %v33 = vsub.s32 0, %v32
  %v34 = vrot.slane %v24, %v33
  %v35 = vlaneseq
  %v36 = vshrl.u32 %v35, 7
  %v37 = vsub.s32 0, %v36
  %v38 = vrot.slane %v25, %v37
  %v39 = vmul.f32 %v29, %v34
  %v40 = vmul.f32 %v29, %v38
  %v41 = vadd.f32 %v39, 0.0
  %v42 = vadd.f32 %v40, 0.0
  %43 = vset.pattern.permute.xlu0 1
  %44 = vperm.xlu0 %43, %v23
  %v45 = vpop.permute.xlu0 %44
  %v47 = vlaneseq
  %v48 = vshrl.u32 %v47, 7
  %v49 = vsub.s32 1, %v48
  %v50 = vrot.slane %v24, %v49
  %v51 = vlaneseq
  %v52 = vshrl.u32 %v51, 7
  %v53 = vsub.s32 1, %v52
  %v54 = vrot.slane %v25, %v53
  %v55 = vmul.f32 %v45, %v50
  %v56 = vmul.f32 %v45, %v54
  %v57 = vadd.f32 %v41, %v55
  %v58 = vadd.f32 %v42, %v56
  %59 = vset.pattern.permute.xlu0 2
  %60 = vperm.xlu0 %59, %v23
  %v61 = vpop.permute.xlu0 %60
  %v63 = vlaneseq
  %v64 = vshrl.u32 %v63, 7
  %v65 = vsub.s32 2, %v64
  %v66 = vrot.slane %v24, %v65
  %v67 = vlaneseq
  %v68 = vshrl.u32 %v67, 7
  %v69 = vsub.s32 2, %v68
  %v70 = vrot.slane %v25, %v69
  %v71 = vmul.f32 %v61, %v66
  %v72 = vmul.f32 %v61, %v70
  %v73 = vadd.f32 %v57, %v71
  %v74 = vadd.f32 %v58, %v72
  %75 = vset.pattern.permute.xlu0 3
  %76 = vperm.xlu0 %75, %v23
  %v77 = vpop.permute.xlu0 %76
  %v79 = vlaneseq
  %v80 = vshrl.u32 %v79, 7
  %v81 = vsub.s32 3, %v80
  %v82 = vrot.slane %v24, %v81
  %v83 = vlaneseq
  %v84 = vshrl.u32 %v83, 7
  %v85 = vsub.s32 3, %v84
  %v86 = vrot.slane %v25, %v85
  %v87 = vmul.f32 %v77, %v82
  %v88 = vmul.f32 %v77, %v86
  %v89 = vadd.f32 %v73, %v87
  %v90 = vadd.f32 %v74, %v88
  %91 = vset.pattern.permute.xlu0 4
  %92 = vperm.xlu0 %91, %v23
  %v93 = vpop.permute.xlu0 %92
  %v95 = vmul.f32 %v93, %v34
  %v96 = vmul.f32 %v93, %v38
  %99 = vrot.lane.b32.xlu0 %v95, 127
  %v100 = vpop.permute.xlu0 %99
  %101 = vrot.lane.b32.xlu0 %v96, 127
  %v102 = vpop.permute.xlu0 %101
  %v105 = vadd.f32 %v89, %v100
  %v106 = vadd.f32 %v90, %v102
  %107 = vset.pattern.permute.xlu0 5
  %108 = vperm.xlu0 %107, %v23
  %v109 = vpop.permute.xlu0 %108
  %v111 = vmul.f32 %v109, %v50
  %v112 = vmul.f32 %v109, %v54
  %115 = vrot.lane.b32.xlu0 %v111, 127
  %v116 = vpop.permute.xlu0 %115
  %117 = vrot.lane.b32.xlu0 %v112, 127
  %v118 = vpop.permute.xlu0 %117
  %v121 = vadd.f32 %v105, %v116
  %v122 = vadd.f32 %v106, %v118
  %123 = vset.pattern.permute.xlu0 6
  %124 = vperm.xlu0 %123, %v23
  %v125 = vpop.permute.xlu0 %124
  %v127 = vmul.f32 %v125, %v66
  %v128 = vmul.f32 %v125, %v70
  %131 = vrot.lane.b32.xlu0 %v127, 127
  %v132 = vpop.permute.xlu0 %131
  %133 = vrot.lane.b32.xlu0 %v128, 127
  %v134 = vpop.permute.xlu0 %133
  %v137 = vadd.f32 %v121, %v132
  %v138 = vadd.f32 %v122, %v134
  %139 = vset.pattern.permute.xlu0 7
  %140 = vperm.xlu0 %139, %v23
  %v141 = vpop.permute.xlu0 %140
  %v143 = vmul.f32 %v141, %v82
  %v144 = vmul.f32 %v141, %v86
  %147 = vrot.lane.b32.xlu0 %v143, 127
  %v148 = vpop.permute.xlu0 %147
  %149 = vrot.lane.b32.xlu0 %v144, 127
  %v150 = vpop.permute.xlu0 %149
  %v153 = vadd.f32 %v137, %v148
  %v154 = vadd.f32 %v138, %v150
  %155 = vset.pattern.permute.xlu0 8
  %156 = vperm.xlu0 %155, %v23
  %v157 = vpop.permute.xlu0 %156
  %v159 = vmul.f32 %v157, %v34
  %v160 = vmul.f32 %v157, %v38
  %163 = vrot.lane.b32.xlu0 %v159, 126
  %v164 = vpop.permute.xlu0 %163
  %165 = vrot.lane.b32.xlu0 %v160, 126
  %v166 = vpop.permute.xlu0 %165
  %v169 = vadd.f32 %v153, %v164
  %v170 = vadd.f32 %v154, %v166
  %171 = vset.pattern.permute.xlu0 9
  %172 = vperm.xlu0 %171, %v23
  %v173 = vpop.permute.xlu0 %172
  %v175 = vmul.f32 %v173, %v50
  %v176 = vmul.f32 %v173, %v54
  %179 = vrot.lane.b32.xlu0 %v175, 126
  %v180 = vpop.permute.xlu0 %179
  %181 = vrot.lane.b32.xlu0 %v176, 126
  %v182 = vpop.permute.xlu0 %181
  %v185 = vadd.f32 %v169, %v180
  %v186 = vadd.f32 %v170, %v182
  %187 = vset.pattern.permute.xlu0 10
  %188 = vperm.xlu0 %187, %v23
  %v189 = vpop.permute.xlu0 %188
  %v191 = vmul.f32 %v189, %v66
  %v192 = vmul.f32 %v189, %v70
  %195 = vrot.lane.b32.xlu0 %v191, 126
  %v196 = vpop.permute.xlu0 %195
  %197 = vrot.lane.b32.xlu0 %v192, 126
  %v198 = vpop.permute.xlu0 %197
  %v201 = vadd.f32 %v185, %v196
  %v202 = vadd.f32 %v186, %v198
  %203 = vset.pattern.permute.xlu0 11
  %204 = vperm.xlu0 %203, %v23
  %v205 = vpop.permute.xlu0 %204
  %v207 = vmul.f32 %v205, %v82
  %v208 = vmul.f32 %v205, %v86
  %211 = vrot.lane.b32.xlu0 %v207, 126
  %v212 = vpop.permute.xlu0 %211
  %213 = vrot.lane.b32.xlu0 %v208, 126
  %v214 = vpop.permute.xlu0 %213
  %v217 = vadd.f32 %v201, %v212
  %v218 = vadd.f32 %v202, %v214
  %219 = vset.pattern.permute.xlu0 12
  %220 = vperm.xlu0 %219, %v23
  %v221 = vpop.permute.xlu0 %220
  %v223 = vmul.f32 %v221, %v34
  %v224 = vmul.f32 %v221, %v38
  %227 = vrot.lane.b32.xlu0 %v223, 118
  %v228 = vpop.permute.xlu0 %227
  %229 = vrot.lane.b32.xlu0 %v224, 118
  %v230 = vpop.permute.xlu0 %229
  %v233 = vadd.f32 %v217, %v228
  %v234 = vadd.f32 %v218, %v230
  %235 = vset.pattern.permute.xlu0 13
  %236 = vperm.xlu0 %235, %v23
  %v237 = vpop.permute.xlu0 %236
  %v239 = vmul.f32 %v237, %v50
  %v240 = vmul.f32 %v237, %v54
  %243 = vrot.lane.b32.xlu0 %v239, 118
  %v244 = vpop.permute.xlu0 %243
  %245 = vrot.lane.b32.xlu0 %v240, 118
  %v246 = vpop.permute.xlu0 %245
  %v249 = vadd.f32 %v233, %v244
  %v250 = vadd.f32 %v234, %v246
  %251 = vset.pattern.permute.xlu0 14
  %252 = vperm.xlu0 %251, %v23
  %v253 = vpop.permute.xlu0 %252
  %v255 = vmul.f32 %v253, %v66
  %v256 = vmul.f32 %v253, %v70
  %259 = vrot.lane.b32.xlu0 %v255, 118
  %v260 = vpop.permute.xlu0 %259
  %261 = vrot.lane.b32.xlu0 %v256, 118
  %v262 = vpop.permute.xlu0 %261
  %v265 = vadd.f32 %v249, %v260
  %v266 = vadd.f32 %v250, %v262
  %267 = vset.pattern.permute.xlu0 15
  %268 = vperm.xlu0 %267, %v23
  %v269 = vpop.permute.xlu0 %268
  %v271 = vmul.f32 %v269, %v82
  %v272 = vmul.f32 %v269, %v86
  %275 = vrot.lane.b32.xlu0 %v271, 118
  %v276 = vpop.permute.xlu0 %275
  %277 = vrot.lane.b32.xlu0 %v272, 118
  %v278 = vpop.permute.xlu0 %277
  %v281 = vadd.f32 %v265, %v276
  %v282 = vadd.f32 %v266, %v278
  %283 = vset.pattern.permute.xlu0 16
  %284 = vperm.xlu0 %283, %v23
  %v285 = vpop.permute.xlu0 %284
  %v287 = vmul.f32 %v285, %v34
  %v288 = vmul.f32 %v285, %v38
  %291 = vrot.lane.b32.xlu0 %v287, 117
  %v292 = vpop.permute.xlu0 %291
  %293 = vrot.lane.b32.xlu0 %v288, 117
  %v294 = vpop.permute.xlu0 %293
  %v297 = vadd.f32 %v281, %v292
  %v298 = vadd.f32 %v282, %v294
  %299 = vset.pattern.permute.xlu0 17
  %300 = vperm.xlu0 %299, %v23
  %v301 = vpop.permute.xlu0 %300
  %v303 = vmul.f32 %v301, %v50
  %v304 = vmul.f32 %v301, %v54
  %307 = vrot.lane.b32.xlu0 %v303, 117
  %v308 = vpop.permute.xlu0 %307
  %309 = vrot.lane.b32.xlu0 %v304, 117
  %v310 = vpop.permute.xlu0 %309
  %v313 = vadd.f32 %v297, %v308
  %v314 = vadd.f32 %v298, %v310
  %315 = vset.pattern.permute.xlu0 18
  %316 = vperm.xlu0 %315, %v23
  %v317 = vpop.permute.xlu0 %316
  %v319 = vmul.f32 %v317, %v66
  %v320 = vmul.f32 %v317, %v70
  %323 = vrot.lane.b32.xlu0 %v319, 117
  %v324 = vpop.permute.xlu0 %323
  %325 = vrot.lane.b32.xlu0 %v320, 117
  %v326 = vpop.permute.xlu0 %325
  %v329 = vadd.f32 %v313, %v324
  %v330 = vadd.f32 %v314, %v326
  %331 = vset.pattern.permute.xlu0 19
  %332 = vperm.xlu0 %331, %v23
  %v333 = vpop.permute.xlu0 %332
  %v335 = vmul.f32 %v333, %v82
  %v336 = vmul.f32 %v333, %v86
  %339 = vrot.lane.b32.xlu0 %v335, 117
  %v340 = vpop.permute.xlu0 %339
  %341 = vrot.lane.b32.xlu0 %v336, 117
  %v342 = vpop.permute.xlu0 %341
  %v345 = vadd.f32 %v329, %v340
  %v346 = vadd.f32 %v330, %v342
  %347 = vset.pattern.permute.xlu0 20
  %348 = vperm.xlu0 %347, %v23
  %v349 = vpop.permute.xlu0 %348
  %v351 = vmul.f32 %v349, %v34
  %v352 = vmul.f32 %v349, %v38
  %355 = vrot.lane.b32.xlu0 %v351, 116
  %v356 = vpop.permute.xlu0 %355
  %357 = vrot.lane.b32.xlu0 %v352, 116
  %v358 = vpop.permute.xlu0 %357
  %v361 = vadd.f32 %v345, %v356
  %v362 = vadd.f32 %v346, %v358
  %363 = vset.pattern.permute.xlu0 21
  %364 = vperm.xlu0 %363, %v23
  %v365 = vpop.permute.xlu0 %364
  %v367 = vmul.f32 %v365, %v50
  %v368 = vmul.f32 %v365, %v54
  %371 = vrot.lane.b32.xlu0 %v367, 116
  %v372 = vpop.permute.xlu0 %371
  %373 = vrot.lane.b32.xlu0 %v368, 116
  %v374 = vpop.permute.xlu0 %373
  %v377 = vadd.f32 %v361, %v372
  %v378 = vadd.f32 %v362, %v374
  %379 = vset.pattern.permute.xlu0 22
  %380 = vperm.xlu0 %379, %v23
  %v381 = vpop.permute.xlu0 %380
  %v383 = vmul.f32 %v381, %v66
  %v384 = vmul.f32 %v381, %v70
  %387 = vrot.lane.b32.xlu0 %v383, 116
  %v388 = vpop.permute.xlu0 %387
  %389 = vrot.lane.b32.xlu0 %v384, 116
  %v390 = vpop.permute.xlu0 %389
  %v393 = vadd.f32 %v377, %v388
  %v394 = vadd.f32 %v378, %v390
  %395 = vset.pattern.permute.xlu0 23
  %396 = vperm.xlu0 %395, %v23
  %v397 = vpop.permute.xlu0 %396
  %v399 = vmul.f32 %v397, %v82
  %v400 = vmul.f32 %v397, %v86
  %403 = vrot.lane.b32.xlu0 %v399, 116
  %v404 = vpop.permute.xlu0 %403
  %405 = vrot.lane.b32.xlu0 %v400, 116
  %v406 = vpop.permute.xlu0 %405
  %v409 = vadd.f32 %v393, %v404
  %v410 = vadd.f32 %v394, %v406
  %411 = vset.pattern.permute.xlu0 24
  %412 = vperm.xlu0 %411, %v23
  %v413 = vpop.permute.xlu0 %412
  %v415 = vmul.f32 %v413, %v34
  %v416 = vmul.f32 %v413, %v38
  %419 = vrot.lane.b32.xlu0 %v415, 108
  %v420 = vpop.permute.xlu0 %419
  %421 = vrot.lane.b32.xlu0 %v416, 108
  %v422 = vpop.permute.xlu0 %421
  %v425 = vadd.f32 %v409, %v420
  %v426 = vadd.f32 %v410, %v422
  %427 = vset.pattern.permute.xlu0 25
  %428 = vperm.xlu0 %427, %v23
  %v429 = vpop.permute.xlu0 %428
  %v431 = vmul.f32 %v429, %v50
  %v432 = vmul.f32 %v429, %v54
  %435 = vrot.lane.b32.xlu0 %v431, 108
  %v436 = vpop.permute.xlu0 %435
  %437 = vrot.lane.b32.xlu0 %v432, 108
  %v438 = vpop.permute.xlu0 %437
  %v441 = vadd.f32 %v425, %v436
  %v442 = vadd.f32 %v426, %v438
  %443 = vset.pattern.permute.xlu0 26
  %444 = vperm.xlu0 %443, %v23
  %v445 = vpop.permute.xlu0 %444
  %v447 = vmul.f32 %v445, %v66
  %v448 = vmul.f32 %v445, %v70
  %451 = vrot.lane.b32.xlu0 %v447, 108
  %v452 = vpop.permute.xlu0 %451
  %453 = vrot.lane.b32.xlu0 %v448, 108
  %v454 = vpop.permute.xlu0 %453
  %v457 = vadd.f32 %v441, %v452
  %v458 = vadd.f32 %v442, %v454
  %459 = vset.pattern.permute.xlu0 27
  %460 = vperm.xlu0 %459, %v23
  %v461 = vpop.permute.xlu0 %460
  %v463 = vmul.f32 %v461, %v82
  %v464 = vmul.f32 %v461, %v86
  %467 = vrot.lane.b32.xlu0 %v463, 108
  %v468 = vpop.permute.xlu0 %467
  %469 = vrot.lane.b32.xlu0 %v464, 108
  %v470 = vpop.permute.xlu0 %469
  %v473 = vadd.f32 %v457, %v468
  %v474 = vadd.f32 %v458, %v470
  %475 = vset.pattern.permute.xlu0 28
  %476 = vperm.xlu0 %475, %v23
  %v477 = vpop.permute.xlu0 %476
  %v479 = vmul.f32 %v477, %v34
  %v480 = vmul.f32 %v477, %v38
  %483 = vrot.lane.b32.xlu0 %v479, 107
  %v484 = vpop.permute.xlu0 %483
  %485 = vrot.lane.b32.xlu0 %v480, 107
  %v486 = vpop.permute.xlu0 %485
  %v489 = vadd.f32 %v473, %v484
  %v490 = vadd.f32 %v474, %v486
  %491 = vset.pattern.permute.xlu0 29
  %492 = vperm.xlu0 %491, %v23
  %v493 = vpop.permute.xlu0 %492
  %v495 = vmul.f32 %v493, %v50
  %v496 = vmul.f32 %v493, %v54
  %499 = vrot.lane.b32.xlu0 %v495, 107
  %v500 = vpop.permute.xlu0 %499
  %501 = vrot.lane.b32.xlu0 %v496, 107
  %v502 = vpop.permute.xlu0 %501
  %v505 = vadd.f32 %v489, %v500
  %v506 = vadd.f32 %v490, %v502
  %507 = vset.pattern.permute.xlu0 30
  %508 = vperm.xlu0 %507, %v23
  %v509 = vpop.permute.xlu0 %508
  %v511 = vmul.f32 %v509, %v66
  %v512 = vmul.f32 %v509, %v70
  %515 = vrot.lane.b32.xlu0 %v511, 107
  %v516 = vpop.permute.xlu0 %515
  %517 = vrot.lane.b32.xlu0 %v512, 107
  %v518 = vpop.permute.xlu0 %517
  %v521 = vadd.f32 %v505, %v516
  %v522 = vadd.f32 %v506, %v518
  %523 = vset.pattern.permute.xlu0 31
  %524 = vperm.xlu0 %523, %v23
  %v525 = vpop.permute.xlu0 %524
  %v527 = vmul.f32 %v525, %v82
  %v528 = vmul.f32 %v525, %v86
  %531 = vrot.lane.b32.xlu0 %v527, 107
  %v532 = vpop.permute.xlu0 %531
  %533 = vrot.lane.b32.xlu0 %v528, 107
  %v534 = vpop.permute.xlu0 %533
  %v537 = vadd.f32 %v521, %v532
  %v538 = vadd.f32 %v522, %v534
  %539 = vset.pattern.permute.xlu0 32
  %540 = vperm.xlu0 %539, %v23
  %v541 = vpop.permute.xlu0 %540
  %v543 = vmul.f32 %v541, %v34
  %v544 = vmul.f32 %v541, %v38
  %547 = vrot.lane.b32.xlu0 %v543, 106
  %v548 = vpop.permute.xlu0 %547
  %549 = vrot.lane.b32.xlu0 %v544, 106
  %v550 = vpop.permute.xlu0 %549
  %v553 = vadd.f32 %v537, %v548
  %v554 = vadd.f32 %v538, %v550
  %555 = vset.pattern.permute.xlu0 33
  %556 = vperm.xlu0 %555, %v23
  %v557 = vpop.permute.xlu0 %556
  %v559 = vmul.f32 %v557, %v50
  %v560 = vmul.f32 %v557, %v54
  %563 = vrot.lane.b32.xlu0 %v559, 106
  %v564 = vpop.permute.xlu0 %563
  %565 = vrot.lane.b32.xlu0 %v560, 106
  %v566 = vpop.permute.xlu0 %565
  %v569 = vadd.f32 %v553, %v564
  %v570 = vadd.f32 %v554, %v566
  %571 = vset.pattern.permute.xlu0 34
  %572 = vperm.xlu0 %571, %v23
  %v573 = vpop.permute.xlu0 %572
  %v575 = vmul.f32 %v573, %v66
  %v576 = vmul.f32 %v573, %v70
  %579 = vrot.lane.b32.xlu0 %v575, 106
  %v580 = vpop.permute.xlu0 %579
  %581 = vrot.lane.b32.xlu0 %v576, 106
  %v582 = vpop.permute.xlu0 %581
  %v585 = vadd.f32 %v569, %v580
  %v586 = vadd.f32 %v570, %v582
  %587 = vset.pattern.permute.xlu0 35
  %588 = vperm.xlu0 %587, %v23
  %v589 = vpop.permute.xlu0 %588
  %v591 = vmul.f32 %v589, %v82
  %v592 = vmul.f32 %v589, %v86
  %595 = vrot.lane.b32.xlu0 %v591, 106
  %v596 = vpop.permute.xlu0 %595
  %597 = vrot.lane.b32.xlu0 %v592, 106
  %v598 = vpop.permute.xlu0 %597
  %v601 = vadd.f32 %v585, %v596
  %v602 = vadd.f32 %v586, %v598
  %v603 = vld [vmem:[%s2] sm:$0xff]
  %v604 = vld [vmem:[%s2 + $0x8] sm:$0xff]
  %v605 = vld [vmem:[%s2 + $0x10] sm:$0xff]
  %v606 = vld [vmem:[%s2 + $0x18] sm:$0xff]
  %v607 = vld [vmem:[%s2 + $0x20] sm:$0xff]
  %v608 = vld [vmem:[%s2 + $0x28] sm:$0xff]
  %v609 = vld [vmem:[%s2 + $0x30] sm:$0xff]
  %v610 = vld [vmem:[%s2 + $0x38] sm:$0xff]
  %v611 = vld [vmem:[%s2 + $0x40] sm:$0xff]
  %v612 = vld [vmem:[%s2 + $0x48] sm:$0xff]
  %v613 = vld [vmem:[%s2 + $0x50] sm:$0xff]
  %v614 = vld [vmem:[%s2 + $0x58] sm:$0xff]
  %v615 = vld [vmem:[%s2 + $0x60] sm:$0xff]
  %v616 = vld [vmem:[%s2 + $0x68] sm:$0xff]
  %v617 = vld [vmem:[%s2 + $0x70] sm:$0xff]
  %v618 = vld [vmem:[%s2 + $0x78] sm:$0xff]
  %v619 = vld [vmem:[%s2 + $0x80] sm:$0xff]
  %v620 = vld [vmem:[%s2 + $0x88] sm:$0xff]
  %v621 = vld [vmem:[%s2 + $0x90] sm:$0x3f]
  %v622 = vld [vmem:[%s2 + $0x98] sm:$0x3f]
  %vm623 = vcmask 637952
  %v625 = vsel %vm623, %v601, 0
  %v628 = vsel %vm623, %v602, 0
  %vm630 = vcmask 1045504
  %v632 = vsel %vm630, %v621, 0
  %v635 = vsel %vm630, %v622, 0
  %637 = vmatprep.subr.mxu0 0.0
  %638 = vmatpush1.msra.mxu0 0.0
  %639 = vmatprep.subr.mxu0 0.0
  %640 = vmatpush1.msra.mxu0 0.0
  %641 = vmatprep.subr.mxu0 0.0
  %642 = vmatpush1.msra.mxu0 0.0
  %643 = vmatprep.subr.mxu0 0.0
  %644 = vmatpush1.msra.mxu0 0.0
  %645 = vmatprep.subr.mxu0 0.0
  %646 = vmatpush1.msra.mxu0 0.0
  %647 = vmatprep.subr.mxu0 0.0
  %648 = vmatpush1.msra.mxu0 0.0
  %649 = vmatprep.subr.mxu0 %v635
  %650 = vmatpush1.msra.mxu0 %v632
  %651 = vmatprep.subr.mxu0 %v620
  %652 = vmatpush1.msra.mxu0 %v619
  %653 = vmatprep.subr.mxu0 %v618
  %654 = vmatpush1.msra.mxu0 %v617
  %655 = vmatprep.subr.mxu0 %v616
  %656 = vmatpush1.msra.mxu0 %v615
  %657 = vmatprep.subr.mxu0 %v614
  %658 = vmatpush1.msra.mxu0 %v613
  %659 = vmatprep.subr.mxu0 %v612
  %660 = vmatpush1.msra.mxu0 %v611
  %661 = vmatprep.subr.mxu0 %v610
  %662 = vmatpush1.msra.mxu0 %v609
  %663 = vmatprep.subr.mxu0 %v608
  %664 = vmatpush1.msra.mxu0 %v607
  %665 = vmatprep.subr.mxu0 %v606
  %666 = vmatpush1.msra.mxu0 %v605
  %667 = vmatprep.subr.mxu0 %v604
  %668 = vmatpush1.msra.mxu0 %v603
  %669 = vmatprep.subr.mxu0 0.0
  %670 = vmatpush2.msra.mxu0 0.0
  %671 = vmatprep.subr.mxu0 0.0
  %672 = vmatpush2.msra.mxu0 0.0
  %673 = vmatprep.subr.mxu0 0.0
  %674 = vmatpush2.msra.mxu0 0.0
  %675 = vmatprep.subr.mxu0 0.0
  %676 = vmatpush2.msra.mxu0 0.0
  %677 = vmatprep.subr.mxu0 0.0
  %678 = vmatpush2.msra.mxu0 0.0
  %679 = vmatprep.subr.mxu0 0.0
  %680 = vmatpush2.msra.mxu0 0.0
  %681 = vmatprep.subr.mxu0 0.0
  %682 = vmatpush2.msra.mxu0 0.0
  %683 = vmatprep.subr.mxu0 0.0
  %684 = vmatpush2.msra.mxu0 0.0
  %685 = vmatprep.subr.mxu0 0.0
  %686 = vmatpush2.msra.mxu0 0.0
  %687 = vmatprep.subr.mxu0 0.0
  %688 = vmatpush2.msra.mxu0 0.0
  %689 = vmatprep.subr.mxu0 0.0
  %690 = vmatpush2.msra.mxu0 0.0
  %691 = vmatprep.subr.mxu0 0.0
  %692 = vmatpush2.msra.mxu0 0.0
  %693 = vmatprep.subr.mxu0 0.0
  %694 = vmatpush2.msra.mxu0 0.0
  %695 = vmatprep.subr.mxu0 0.0
  %696 = vmatpush2.msra.mxu0 0.0
  %697 = vmatprep.subr.mxu0 0.0
  %698 = vmatpush2.msra.mxu0 0.0
  %699 = vmatprep.subr.mxu0 0.0
  %700 = vmatpush2.msra.mxu0 0.0
  %701 = vmatprep.mubr.f32.mxu0 0.0
  %702 = vmatmul.mubr.f32.gmra.mxu0 %v625
  %v703 = vpop.f32.mrf.mxu0
  %v704 = vadd.f32 0.0, %v703
  %v705 = vpop.f32.mrf.mxu0
  %v706 = vadd.f32 0.0, %v705
  %707 = vmatprep.mubr.f32.mxu0 0.0
  %708 = vmatmul.mubr.f32.gmra.mxu0 %v628
  %v709 = vpop.f32.mrf.mxu0
  %v710 = vadd.f32 0.0, %v709
  %v711 = vpop.f32.mrf.mxu0
  %v712 = vadd.f32 0.0, %v711
  %713 = vdwg.mxu0
  %714 = vset.pattern.permute.xlu0 36
  %715 = vperm.xlu0 %714, %v23
  %v716 = vpop.permute.xlu0 %715
  %v718 = vadd.f32 %v704, %v716
  %v719 = vadd.f32 %v706, %v716
  %v720 = vadd.f32 %v710, %v716
  %v721 = vadd.f32 %v712, %v716
  %v722 = vmax.f32 %v718, 0.0
  %v723 = vmax.f32 %v719, 0.0
  %v724 = vmax.f32 %v720, 0.0
  %v725 = vmax.f32 %v721, 0.0
  %v726 = vld [vmem:[%s0] sm:$0xff]
  %v727 = vld [vmem:[%s0 + $0x8] sm:$0xff]
  %v728 = vld [vmem:[%s0 + $0x10] sm:$0xff]
  %v729 = vld [vmem:[%s0 + $0x18] sm:$0xff]
  %v730 = vmul.f32 %v726, %v722
  %v731 = vmul.f32 %v727, %v723
  %v732 = vmul.f32 %v728, %v724
  %v733 = vmul.f32 %v729, %v725
  %734 = vset.pattern.permute.xlu0 37
  %735 = vperm.xlu0 %734, %v23
  %v736 = vpop.permute.xlu0 %735
  %v738 = vmul.f32 %v730, %v736
  %v739 = vmul.f32 %v731, %v736
  %v740 = vmul.f32 %v732, %v736
  %v741 = vmul.f32 %v733, %v736
  %v742 = vrot.slane %v738, 4
  %v743 = vadd.f32 %v738, %v742
  %v744 = vrot.slane %v743, 2
  %v745 = vadd.f32 %v743, %v744
  %v746 = vrot.slane %v745, 1
  %v747 = vadd.f32 %v745, %v746
  %v748 = vrot.slane %v739, 4
  %v749 = vadd.f32 %v739, %v748
  %v750 = vrot.slane %v749, 2
  %v751 = vadd.f32 %v749, %v750
  %v752 = vrot.slane %v751, 1
  %v753 = vadd.f32 %v751, %v752
  %v754 = vrot.slane %v740, 4
  %v755 = vadd.f32 %v740, %v754
  %v756 = vrot.slane %v755, 2
  %v757 = vadd.f32 %v755, %v756
  %v758 = vrot.slane %v757, 1
  %v759 = vadd.f32 %v757, %v758
  %v760 = vrot.slane %v741, 4
  %v761 = vadd.f32 %v741, %v760
  %v762 = vrot.slane %v761, 2
  %v763 = vadd.f32 %v761, %v762
  %v764 = vrot.slane %v763, 1
  %v765 = vadd.f32 %v763, %v764
  %v766 = vmax.f32 %v747, %v753
  %767 = vmax.xlane.f32.xlu0 %v766
  %v768 = vpop.xlane.xlu0 %767
  %v769 = vmax.f32 %v759, %v765
  %770 = vmax.xlane.f32.xlu0 %v769
  %v771 = vpop.xlane.xlu0 %770
  %v772 = vsub.f32 %v747, %v768
  %v773 = vsub.f32 %v753, %v768
  %v774 = vsub.f32 %v759, %v771
  %v775 = vsub.f32 %v765, %v771
  %v776 = vmul.f32 %v772, 1.442695
  %v777 = vpow.pop %v776
  %v778 = vmul.f32 %v773, 1.442695
  %v779 = vpow.pop %v778
  %v780 = vmul.f32 %v774, 1.442695
  %v781 = vpow.pop %v780
  %v782 = vmul.f32 %v775, 1.442695
  %v783 = vpow.pop %v782
  %v784 = vadd.f32 %v777, %v779
  %785 = vadd.xlane.f32.xlu0 %v784
  %v786 = vpop.xlane.xlu0 %785
  %v787 = vadd.f32 %v781, %v783
  %788 = vadd.xlane.f32.xlu0 %v787
  %v789 = vpop.xlane.xlu0 %788
  %v790 = vrcp.pop %v786
  %v791 = vmul.f32 1.0, %v790
  %v792 = vrcp.pop %v789
  %v793 = vmul.f32 1.0, %v792
  %v794 = vmul.f32 %v730, %v777
  %v795 = vmul.f32 %v731, %v779
  %v796 = vmul.f32 %v732, %v781
  %v797 = vmul.f32 %v733, %v783
  %v798 = vadd.f32 %v794, %v795
  %799 = vadd.xlane.f32.xlu0 %v798
  %v800 = vpop.xlane.xlu0 %799
  %v801 = vadd.f32 %v796, %v797
  %802 = vadd.xlane.f32.xlu0 %v801
  %v803 = vpop.xlane.xlu0 %802
  %v804 = vmul.f32 %v800, %v791
  %v805 = vmul.f32 %v803, %v793
  %v806 = vld [vmem:[%s5] sm:$0x7]
  %v807 = vmul.f32 %v23, %v804
  %v808 = vmul.f32 %v23, %v805
  %vm809 = vcmask 441648
  %v810 = vsel %vm809, %v807, 0.0
  %v811 = vrot.slane %v810, 4
  %v812 = vadd.f32 %v810, %v811
  %v813 = vrot.slane %v812, 2
  %v814 = vadd.f32 %v812, %v813
  %v815 = vrot.slane %v814, 1
  %v816 = vadd.f32 %v814, %v815
  %v817 = vsel %vm809, %v808, 0.0
  %v818 = vrot.slane %v817, 4
  %v819 = vadd.f32 %v817, %v818
  %v820 = vrot.slane %v819, 2
  %v821 = vadd.f32 %v819, %v820
  %v822 = vrot.slane %v821, 1
  %v823 = vadd.f32 %v821, %v822
  %825 = vrot.lane.b32.xlu0 %v806, 38
  %v826 = vpop.permute.xlu0 %825
  %v828 = vadd.f32 %v816, %v826
  %v829 = vadd.f32 %v823, %v826
  %832 = vrot.lane.b32.xlu0 %v828, 90
  %v833 = vpop.permute.xlu0 %832
  %834 = vrot.lane.b32.xlu0 %v829, 90
  %v835 = vpop.permute.xlu0 %834
  %vm838 = vcmask 57344
  %v839 = vsel %vm838, %v833, 0.0
  %840 = vadd.xlane.f32.xlu0 %v839
  %v841 = vpop.xlane.xlu0 %840
  %v842 = vsel %vm838, %v835, 0.0
  %843 = vadd.xlane.f32.xlu0 %v842
  %v844 = vpop.xlane.xlu0 %843
  %v845 = vrcp.pop 8.0
  %v846 = vmul.f32 %v841, %v845
  %v847 = vmul.f32 %v844, %v845
  %v848 = vsub.f32 %v828, %v846
  %v849 = vsub.f32 %v829, %v847
  %v850 = vmul.f32 %v848, %v848
  %v851 = vmul.f32 %v849, %v849
  %854 = vrot.lane.b32.xlu0 %v850, 90
  %v855 = vpop.permute.xlu0 %854
  %856 = vrot.lane.b32.xlu0 %v851, 90
  %v857 = vpop.permute.xlu0 %856
  %v860 = vsel %vm838, %v855, 0.0
  %861 = vadd.xlane.f32.xlu0 %v860
  %v862 = vpop.xlane.xlu0 %861
  %v863 = vsel %vm838, %v857, 0.0
  %864 = vadd.xlane.f32.xlu0 %v863
  %v865 = vpop.xlane.xlu0 %864
  %v866 = vmul.f32 %v862, %v845
  %v867 = vmul.f32 %v865, %v845
  %v868 = vadd.f32 %v866, 1e-05
  %v869 = vadd.f32 %v867, 1e-05
  %v870 = vrsqrt.pop %v868
  %v871 = vrsqrt.pop %v869
  %v872 = vmul.f32 %v848, %v870
  %v873 = vmul.f32 %v849, %v871
  %874 = vrot.lane.b32.xlu0 %v828, 82
  %v875 = vpop.permute.xlu0 %874
  %876 = vrot.lane.b32.xlu0 %v829, 82
  %v877 = vpop.permute.xlu0 %876
  %v880 = vsel %vm838, %v875, 0.0
  %881 = vadd.xlane.f32.xlu0 %v880
  %v882 = vpop.xlane.xlu0 %881
  %v883 = vsel %vm838, %v877, 0.0
  %884 = vadd.xlane.f32.xlu0 %v883
  %v885 = vpop.xlane.xlu0 %884
  %v886 = vmul.f32 %v882, %v845
  %v887 = vmul.f32 %v885, %v845
  %v888 = vsub.f32 %v828, %v886
  %v889 = vsub.f32 %v829, %v887
  %v890 = vmul.f32 %v888, %v888
  %v891 = vmul.f32 %v889, %v889
  %894 = vrot.lane.b32.xlu0 %v890, 82
  %v895 = vpop.permute.xlu0 %894
  %896 = vrot.lane.b32.xlu0 %v891, 82
  %v897 = vpop.permute.xlu0 %896
  %v900 = vsel %vm838, %v895, 0.0
  %901 = vadd.xlane.f32.xlu0 %v900
  %v902 = vpop.xlane.xlu0 %901
  %v903 = vsel %vm838, %v897, 0.0
  %904 = vadd.xlane.f32.xlu0 %v903
  %v905 = vpop.xlane.xlu0 %904
  %v906 = vmul.f32 %v902, %v845
  %v907 = vmul.f32 %v905, %v845
  %v908 = vadd.f32 %v906, 1e-05
  %v909 = vadd.f32 %v907, 1e-05
  %v910 = vrsqrt.pop %v908
  %v911 = vrsqrt.pop %v909
  %v912 = vmul.f32 %v888, %v910
  %v913 = vmul.f32 %v889, %v911
  %916 = vrot.lane.b32.xlu0 %v872, 90
  %v917 = vpop.permute.xlu0 %916
  %918 = vrot.lane.b32.xlu0 %v873, 90
  %v919 = vpop.permute.xlu0 %918
  %924 = vrot.lane.b32.xlu0 %v912, 90
  %v925 = vpop.permute.xlu0 %924
  %926 = vrot.lane.b32.xlu0 %v913, 90
  %v927 = vpop.permute.xlu0 %926
  %vm930 = vcmask 64512
  %v931 = vsel %vm930, %v917, %v925
  %v932 = vsel %vm930, %v919, %v927
  %v933 = vrot.slane %v806, 1
  %v935 = vmul.f32 %v931, %v933
  %v936 = vmul.f32 %v932, %v933
  %v937 = vrot.slane %v806, 2
  %v939 = vadd.f32 %v935, %v937
  %v940 = vadd.f32 %v936, %v937
  %v941 = vmax.f32 %v939, 0.0
  %v942 = vmax.f32 %v940, 0.0
  %v943 = vld [vmem:[%s4] sm:$0xff]
  %v944 = vld [vmem:[%s4 + $0x8] sm:$0xff]
  %v945 = vlaneseq
  %v946 = vshrl.u32 %v945, 7
  %v947 = vsub.s32 0, %v946
  %v948 = vrot.slane %v941, %v947
  %v949 = vlaneseq
  %v950 = vshrl.u32 %v949, 7
  %v951 = vsub.s32 0, %v950
  %v952 = vrot.slane %v942, %v951
  %v953 = vmul.f32 %v943, %v948
  %v954 = vmul.f32 %v944, %v948
  %v955 = vmul.f32 %v943, %v952
  %v956 = vmul.f32 %v944, %v952
  %vm957 = vcmask 130048
  %v958 = vsel %vm957, %v953, 0.0
  %959 = vadd.xlane.f32.xlu0 %v958
  %v960 = vpop.xlane.xlu0 %959
  %v961 = vsel %vm957, %v954, 0.0
  %962 = vadd.xlane.f32.xlu0 %v961
  %v963 = vpop.xlane.xlu0 %962
  %v964 = vsel %vm957, %v955, 0.0
  %965 = vadd.xlane.f32.xlu0 %v964
  %v966 = vpop.xlane.xlu0 %965
  %v967 = vsel %vm957, %v956, 0.0
  %968 = vadd.xlane.f32.xlu0 %v967
  %v969 = vpop.xlane.xlu0 %968
  %v970 = vadd.f32 %v960, %v943
  %v971 = vadd.f32 %v963, %v944
  %v972 = vadd.f32 %v966, %v943
  %v973 = vadd.f32 %v969, %v944
  %v974 = vxor.u32 %v971, 2147483648
  %v975 = vxor.u32 %v973, 2147483648
  %v976 = vmul.f32 %v974, 1.442695
  %v977 = vpow.pop %v976
  %v978 = vmul.f32 %v975, 1.442695
  %v979 = vpow.pop %v978
  %v980 = vadd.f32 %v977, 1.0
  %v981 = vadd.f32 %v979, 1.0
  %v982 = vrcp.pop %v980
  %v983 = vmul.f32 1.0, %v982
  %v984 = vrcp.pop %v981
  %v985 = vmul.f32 1.0, %v984
  %987 = vset.pattern.permute.xlu0 16
  %988 = vperm.xlu0 %987, %v983
  %v989 = vpop.permute.xlu0 %988
  %992 = vset.pattern.permute.xlu0 16
  %993 = vperm.xlu0 %992, %v985
  %v994 = vpop.permute.xlu0 %993
  %v996 = vmul.f32 %v730, %v989
  %v997 = vmul.f32 %v731, %v989
  %v998 = vmul.f32 %v732, %v994
  %v999 = vmul.f32 %v733, %v994
  %1001 = vset.pattern.permute.xlu0 16
  %1002 = vperm.xlu0 %1001, %v970
  %v1003 = vpop.permute.xlu0 %1002
  %1006 = vset.pattern.permute.xlu0 16
  %1007 = vperm.xlu0 %1006, %v972
  %v1008 = vpop.permute.xlu0 %1007
  %v1010 = vadd.f32 %v996, %v1003
  %v1011 = vadd.f32 %v997, %v1003
  %v1012 = vadd.f32 %v998, %v1008
  %v1013 = vadd.f32 %v999, %v1008
  %1014 = vst [vmem:[%s6] sm:$0xff] %v1010
  %1015 = vst [vmem:[%s6 + $0x8] sm:$0xff] %v1011
  %1016 = vst [vmem:[%s6 + $0x10] sm:$0xff] %v1012
  %1017 = vst [vmem:[%s6 + $0x18] sm:$0xff] %v1013
  // Predicated region
  $region26: #{egc_forward.1} parent=0 // pred_check
    _
  $region27: #{egc_forward.1} parent=0 // pred_check_branch
    %1019 = sbr.rel (0) target = $region29
  $region28: #{egc_forward.1} parent=0 // pred_region
    _
  $region29: #{egc_forward.1} parent=0 // pred_fallthru
    _
  // Predicated region
  $region30: #{egc_forward.1} parent=0 // pred_check
    _
  $region31: #{egc_forward.1} parent=0 // pred_check_branch
    %1021 = sbr.rel (0) target = $region33
  $region32: #{egc_forward.1} parent=0 // pred_region
    _
  $region33: #{egc_forward.1} parent=0 // pred_fallthru
    _

</llo_original>
